<compile_context>
chip_gen: v7x
topology: tpu7x:2x2x1
jax: 0.10.0
libtpu: 0.0.40
codegen_flags: <defaults>
</compile_context>

<pallas_src>
import functools

import jax
import jax.numpy as jnp
from jax import lax
from jax.experimental import pallas as pl
from jax.experimental.pallas import tpu as pltpu


def _lstm_skip_kernel(
    # inputs (all resident in VMEM, full blocks)
    x_seq_ref,    # (steps*B, F)  time-major rows for steps 0..output_length
    x_flat_ref,   # (B, T*F)      flattened input (skip path)
    w_ih_s_ref,   # (F, 4H)       LSTM input weights^T, i/f/o columns pre-scaled by 0.5
    w_hh_s_ref,   # (H, 4H)       LSTM recurrent weights^T, i/f/o columns pre-scaled by 0.5
    b_s_ref,      # (1, 4H)       (b_ih + b_hh), i/f/o entries pre-scaled by 0.5
    w_a_ref,      # (H, O)        = w_lstm_out^T @ w_final[:, :O]^T   (folded epilogue)
    w_b_ref,      # (T*F, O)      = w_input_lin^T @ w_final[:, O:]^T  (folded epilogue)
    b_out_ref,    # (1, O)        fused epilogue bias
    # output
    out_ref,      # (B, O)
    *,
    hidden_size,
    batch,
    steps,
):
    H = hidden_size
    B = batch

    # Hoisted input projection for all needed timesteps: one MXU matmul + one
    # broadcast bias add, instead of one matmul + one broadcast per step.
    gates_x = (
        jnp.dot(x_seq_ref[...], w_ih_s_ref[...], preferred_element_type=jnp.float32)
        + b_s_ref[...]
    )  # (steps*B, 4H), already pre-scaled for the tanh-based sigmoid

    w_hh = w_hh_s_ref[...]  # load once, reused every unrolled step

    h = jnp.zeros((B, H), jnp.float32)
    c = jnp.zeros((B, H), jnp.float32)

    # Statically unrolled recurrence with value-carried state (steps is small
    # and static).  Per step: one MXU push, one full-vreg tanh, VPU updates.
    for t in range(steps):
        z = gates_x[t * B:(t + 1) * B, :] + jnp.dot(
            h, w_hh, preferred_element_type=jnp.float32
        )                                           # (B, 4H), i/f/o cols == 0.5 * preact
        tz = jnp.tanh(z)                            # one EUP pass over the full gate tile
        i_g = 0.5 * tz[:, 0 * H:1 * H] + 0.5        # sigmoid(z) = 0.5*tanh(z/2)+0.5
        f_g = 0.5 * tz[:, 1 * H:2 * H] + 0.5
        g_g = tz[:, 2 * H:3 * H]                    # g column was NOT pre-scaled
        o_g = 0.5 * tz[:, 3 * H:4 * H] + 0.5
        c = f_g * c + i_g * g_g
        h = o_g * jnp.tanh(c)

    # h is now lstm_out[:, output_length].  Folded epilogue: 2 matmuls + bias.
    y = (
        jnp.dot(h, w_a_ref[...], preferred_element_type=jnp.float32)
        + jnp.dot(x_flat_ref[...], w_b_ref[...], preferred_element_type=jnp.float32)
        + b_out_ref[...]
    )                                               # (B, O)
    out_ref[...] = y.astype(out_ref.dtype)


def lstm_with_skip_forward(x, params, *, hidden_size, output_length):
    """x: (B, T, F) float32, batch_first (same convention as the PyTorch module)."""
    B, T, F = x.shape
    H = hidden_size
    O = output_length
    if not (0 <= O < T):
        # PyTorch would raise an IndexError on lstm_out[:, output_length].
        raise ValueError(f"output_length ({O}) must be < memory_length ({T})")
    steps = O + 1  # hidden state after processing timestep index O

    # --- glue: layout prep + weight folding (weight-only, constant-folded) ---
    # time-major rows for the needed steps only, flattened to 2-D
    x_seq = jnp.transpose(x, (1, 0, 2))[:steps].reshape(steps * B, F)   # (steps*B, F)
    x_flat = x.reshape(B, T * F)                                        # torch reshape order

    # pre-scale i/f/o gate columns by 0.5 so the kernel can use a single tanh
    # per step:  sigmoid(z) = 0.5 * tanh(0.5*z) + 0.5
    gate_scale = jnp.concatenate(
        [jnp.full((H,), 0.5), jnp.full((H,), 0.5), jnp.ones((H,)), jnp.full((H,), 0.5)]
    ).astype(jnp.float32)                                               # (4H,)
    w_ih_s = params["w_ih"].T * gate_scale[None, :]                     # (F, 4H)
    w_hh_s = params["w_hh"].T * gate_scale[None, :]                     # (H, 4H)
    b_s = ((params["b_ih"] + params["b_hh"]) * gate_scale).reshape(1, 4 * H)

    # fold the 3 output linears (lstm_out_linear, input_linear, final_linear)
    # into 2 matmuls + 1 bias:  y = h_sel @ W_a + x_flat @ W_b + b_out
    w_f_t = params["w_final"].T                                         # (2O, O)
    w_fl_t = w_f_t[:O, :]                                               # multiplies y_lstm
    w_fi_t = w_f_t[O:, :]                                               # multiplies y_input
    w_a = params["w_lstm_out"].T @ w_fl_t                               # (H, O)
    w_b = params["w_input_lin"].T @ w_fi_t                              # (T*F, O)
    b_out = (
        params["b_lstm_out"] @ w_fl_t
        + params["b_input_lin"] @ w_fi_t
        + params["b_final"]
    ).reshape(1, O)

    full = lambda shape: pl.BlockSpec(shape, lambda i: (0,) * len(shape))
    kernel = functools.partial(
        _lstm_skip_kernel, hidden_size=H, batch=B, steps=steps
    )

    args = (x_seq, x_flat, w_ih_s, w_hh_s, b_s, w_a, w_b, b_out)
    return pl.pallas_call(
        kernel,
        out_shape=jax.ShapeDtypeStruct((B, O), jnp.float32),
        grid=(1,),
        in_specs=[full(a.shape) for a in args],
        out_specs=full((B, O)),
        compiler_params=pltpu.CompilerParams(dimension_semantics=("arbitrary",)),
    )(*args)


def lstm_with_skip_reference(x, params, *, hidden_size, output_length):
    """Pure-JAX reference matching the PyTorch forward exactly (for validation).

    Runs the FULL sequence through the LSTM (like nn.LSTM does) so it also
    validates that the kernel's early-stop at output_length is equivalent."""
    B, T, F = x.shape
    H = hidden_size
    O = output_length
    w_ih, w_hh = params["w_ih"], params["w_hh"]
    b = params["b_ih"] + params["b_hh"]

    def step(carry, x_t):
        h, c = carry
        gates = x_t @ w_ih.T + h @ w_hh.T + b
        i = jax.nn.sigmoid(gates[:, 0 * H:1 * H])
        f = jax.nn.sigmoid(gates[:, 1 * H:2 * H])
        g = jnp.tanh(gates[:, 2 * H:3 * H])
        o = jax.nn.sigmoid(gates[:, 3 * H:4 * H])
        c = f * c + i * g
        h = o * jnp.tanh(c)
        return (h, c), h

    h0 = jnp.zeros((B, H), jnp.float32)
    c0 = jnp.zeros((B, H), jnp.float32)
    _, hs = lax.scan(step, (h0, c0), jnp.transpose(x, (1, 0, 2)))
    lstm_out = jnp.transpose(hs, (1, 0, 2))                   # (B, T, H)

    y_lstm = lstm_out[:, O] @ params["w_lstm_out"].T + params["b_lstm_out"]
    y_in = x.reshape(B, F * T) @ params["w_input_lin"].T + params["b_input_lin"]
    y_cat = jnp.concatenate([y_lstm, y_in], axis=1)
    return y_cat @ params["w_final"].T + params["b_final"]


def make_params(key, *, memory_length, hidden_size, output_length, n_features):
    H, T, F, O = hidden_size, memory_length, n_features, output_length
    ks = jax.random.split(key, 10)

    def unif(k, shape, scale):
        return jax.random.uniform(k, shape, jnp.float32, -scale, scale)

    s_lstm = 1.0 / jnp.sqrt(H)
    return {
        "w_ih": unif(ks[0], (4 * H, F), s_lstm),
        "w_hh": unif(ks[1], (4 * H, H), s_lstm),
        "b_ih": unif(ks[2], (4 * H,), s_lstm),
        "b_hh": unif(ks[3], (4 * H,), s_lstm),
        "w_input_lin": unif(ks[4], (O, F * T), 1.0 / jnp.sqrt(F * T)),
        "b_input_lin": unif(ks[5], (O,), 1.0 / jnp.sqrt(F * T)),
        "w_lstm_out": unif(ks[6], (O, H), 1.0 / jnp.sqrt(H)),
        "b_lstm_out": unif(ks[7], (O,), 1.0 / jnp.sqrt(H)),
        "w_final": unif(ks[8], (O, 2 * O), 1.0 / jnp.sqrt(2 * O)),
        "b_final": unif(ks[9], (O,), 1.0 / jnp.sqrt(2 * O)),
    }


if __name__ == "__main__":
    # small, module-consistent shapes
    memory_length = 16   # sequence length T
    hidden_size = 32
    output_length = 8    # also the timestep index picked from lstm_out
    n_features = 2
    batch = 4

    key = jax.random.PRNGKey(0)
    k_x, k_p = jax.random.split(key)
    x = jax.random.normal(k_x, (batch, memory_length, n_features), jnp.float32)
    params = make_params(
        k_p,
        memory_length=memory_length,
        hidden_size=hidden_size,
        output_length=output_length,
        n_features=n_features,
    )

    y = lstm_with_skip_forward(
        x, params, hidden_size=hidden_size, output_length=output_length
    )
    y = jax.block_until_ready(y)

    y_ref = lstm_with_skip_reference(
        x, params, hidden_size=hidden_size, output_length=output_length
    )
    assert y.shape == (batch, output_length)
    assert jnp.allclose(y, y_ref, atol=1e-4, rtol=1e-4), (
        "mismatch vs reference: max abs diff "
        f"{float(jnp.max(jnp.abs(y - y_ref)))}"
    )
    print("KERNEL_OK")
</pallas_src>

<mosaic_0001>
module attributes {stable_mosaic.version = 11 : i64} {
  func.func @_lstm_skip_kernel(%arg0: i32, %arg1: memref<36x2xf32, #tpu.memory_space<vmem>>, %arg2: memref<4x32xf32, #tpu.memory_space<vmem>>, %arg3: memref<2x128xf32, #tpu.memory_space<vmem>>, %arg4: memref<32x128xf32, #tpu.memory_space<vmem>>, %arg5: memref<1x128xf32, #tpu.memory_space<vmem>>, %arg6: memref<32x8xf32, #tpu.memory_space<vmem>>, %arg7: memref<32x8xf32, #tpu.memory_space<vmem>>, %arg8: memref<1x8xf32, #tpu.memory_space<vmem>>, %arg9: memref<4x8xf32, #tpu.memory_space<vmem>>) attributes {dimension_semantics = [#tpu.dimension_semantics<arbitrary>], iteration_bounds = array<i64: 1>, scalar_prefetch = 0 : i64, scratch_operands = 0 : i64, tpu.core_type = #tpu.core_type<tc>, window_params = [{pipeline_mode = #tpu.pipeline_mode<synchronous>, transform_indices = @transform_0, window_bounds = array<i64: 36, 2>}, {pipeline_mode = #tpu.pipeline_mode<synchronous>, transform_indices = @transform_1, window_bounds = array<i64: 4, 32>}, {pipeline_mode = #tpu.pipeline_mode<synchronous>, transform_indices = @transform_2, window_bounds = array<i64: 2, 128>}, {pipeline_mode = #tpu.pipeline_mode<synchronous>, transform_indices = @transform_3, window_bounds = array<i64: 32, 128>}, {pipeline_mode = #tpu.pipeline_mode<synchronous>, transform_indices = @transform_4, window_bounds = array<i64: 1, 128>}, {pipeline_mode = #tpu.pipeline_mode<synchronous>, transform_indices = @transform_5, window_bounds = array<i64: 32, 8>}, {pipeline_mode = #tpu.pipeline_mode<synchronous>, transform_indices = @transform_6, window_bounds = array<i64: 32, 8>}, {pipeline_mode = #tpu.pipeline_mode<synchronous>, transform_indices = @transform_7, window_bounds = array<i64: 1, 8>}, {pipeline_mode = #tpu.pipeline_mode<synchronous>, transform_indices = @transform_8, window_bounds = array<i64: 4, 8>}]} {
    %c0 = arith.constant 0 : index
    %c0_0 = arith.constant 0 : index
    %0 = vector.load %arg1[%c0, %c0_0] : memref<36x2xf32, #tpu.memory_space<vmem>>, vector<36x2xf32>
    %c0_1 = arith.constant 0 : index
    %c0_2 = arith.constant 0 : index
    %1 = vector.load %arg3[%c0_1, %c0_2] : memref<2x128xf32, #tpu.memory_space<vmem>>, vector<2x128xf32>
    %cst = arith.constant dense<0.000000e+00> : vector<36x128xf32>
    %2 = tpu.matmul %0, %1, %cst {dimension_numbers = #tpu.dot_dimension_numbers<[1], [0], [0], [1], [0, 0, 1, 1], [], []>} : vector<36x2xf32>, vector<2x128xf32>, vector<36x128xf32> -> vector<36x128xf32>
    %c0_3 = arith.constant 0 : index
    %c0_4 = arith.constant 0 : index
    %3 = vector.load %arg5[%c0_3, %c0_4] : memref<1x128xf32, #tpu.memory_space<vmem>>, vector<1x128xf32>
    %4 = vector.broadcast %3 : vector<1x128xf32> to vector<36x128xf32>
    %5 = arith.addf %2, %4 : vector<36x128xf32>
    %c0_5 = arith.constant 0 : index
    %c0_6 = arith.constant 0 : index
    %6 = vector.load %arg4[%c0_5, %c0_6] : memref<32x128xf32, #tpu.memory_space<vmem>>, vector<32x128xf32>
    %cst_7 = arith.constant 0.000000e+00 : f32
    %7 = vector.broadcast %cst_7 : f32 to vector<4x32xf32>
    %cst_8 = arith.constant 0.000000e+00 : f32
    %8 = vector.broadcast %cst_8 : f32 to vector<4x32xf32>
    %9 = vector.extract_strided_slice %5 {offsets = [0, 0], sizes = [4, 128], strides = [1, 1]} : vector<36x128xf32> to vector<4x128xf32>
    %cst_9 = arith.constant dense<0.000000e+00> : vector<4x128xf32>
    %10 = tpu.matmul %7, %6, %cst_9 {dimension_numbers = #tpu.dot_dimension_numbers<[1], [0], [0], [1], [0, 0, 1, 1], [], []>} : vector<4x32xf32>, vector<32x128xf32>, vector<4x128xf32> -> vector<4x128xf32>
    %11 = arith.addf %9, %10 : vector<4x128xf32>
    %12 = math.tanh %11 : vector<4x128xf32>
    %13 = vector.extract_strided_slice %12 {offsets = [0, 0], sizes = [4, 32], strides = [1, 1]} : vector<4x128xf32> to vector<4x32xf32>
    %cst_10 = arith.constant 5.000000e-01 : f32
    %14 = vector.broadcast %cst_10 : f32 to vector<4x32xf32>
    %15 = arith.mulf %14, %13 : vector<4x32xf32>
    %cst_11 = arith.constant 5.000000e-01 : f32
    %16 = vector.broadcast %cst_11 : f32 to vector<4x32xf32>
    %17 = arith.addf %15, %16 : vector<4x32xf32>
    %18 = vector.extract_strided_slice %12 {offsets = [0, 32], sizes = [4, 32], strides = [1, 1]} : vector<4x128xf32> to vector<4x32xf32>
    %cst_12 = arith.constant 5.000000e-01 : f32
    %19 = vector.broadcast %cst_12 : f32 to vector<4x32xf32>
    %20 = arith.mulf %19, %18 : vector<4x32xf32>
    %cst_13 = arith.constant 5.000000e-01 : f32
    %21 = vector.broadcast %cst_13 : f32 to vector<4x32xf32>
    %22 = arith.addf %20, %21 : vector<4x32xf32>
    %23 = vector.extract_strided_slice %12 {offsets = [0, 64], sizes = [4, 32], strides = [1, 1]} : vector<4x128xf32> to vector<4x32xf32>
    %24 = vector.extract_strided_slice %12 {offsets = [0, 96], sizes = [4, 32], strides = [1, 1]} : vector<4x128xf32> to vector<4x32xf32>
    %cst_14 = arith.constant 5.000000e-01 : f32
    %25 = vector.broadcast %cst_14 : f32 to vector<4x32xf32>
    %26 = arith.mulf %25, %24 : vector<4x32xf32>
    %cst_15 = arith.constant 5.000000e-01 : f32
    %27 = vector.broadcast %cst_15 : f32 to vector<4x32xf32>
    %28 = arith.addf %26, %27 : vector<4x32xf32>
    %29 = arith.mulf %22, %8 : vector<4x32xf32>
    %30 = arith.mulf %17, %23 : vector<4x32xf32>
    %31 = arith.addf %29, %30 : vector<4x32xf32>
    %32 = math.tanh %31 : vector<4x32xf32>
    %33 = arith.mulf %28, %32 : vector<4x32xf32>
    %34 = vector.extract_strided_slice %5 {offsets = [4, 0], sizes = [4, 128], strides = [1, 1]} : vector<36x128xf32> to vector<4x128xf32>
    %cst_16 = arith.constant dense<0.000000e+00> : vector<4x128xf32>
    %35 = tpu.matmul %33, %6, %cst_16 {dimension_numbers = #tpu.dot_dimension_numbers<[1], [0], [0], [1], [0, 0, 1, 1], [], []>} : vector<4x32xf32>, vector<32x128xf32>, vector<4x128xf32> -> vector<4x128xf32>
    %36 = arith.addf %34, %35 : vector<4x128xf32>
    %37 = math.tanh %36 : vector<4x128xf32>
    %38 = vector.extract_strided_slice %37 {offsets = [0, 0], sizes = [4, 32], strides = [1, 1]} : vector<4x128xf32> to vector<4x32xf32>
    %cst_17 = arith.constant 5.000000e-01 : f32
    %39 = vector.broadcast %cst_17 : f32 to vector<4x32xf32>
    %40 = arith.mulf %39, %38 : vector<4x32xf32>
    %cst_18 = arith.constant 5.000000e-01 : f32
    %41 = vector.broadcast %cst_18 : f32 to vector<4x32xf32>
    %42 = arith.addf %40, %41 : vector<4x32xf32>
    %43 = vector.extract_strided_slice %37 {offsets = [0, 32], sizes = [4, 32], strides = [1, 1]} : vector<4x128xf32> to vector<4x32xf32>
    %cst_19 = arith.constant 5.000000e-01 : f32
    %44 = vector.broadcast %cst_19 : f32 to vector<4x32xf32>
    %45 = arith.mulf %44, %43 : vector<4x32xf32>
    %cst_20 = arith.constant 5.000000e-01 : f32
    %46 = vector.broadcast %cst_20 : f32 to vector<4x32xf32>
    %47 = arith.addf %45, %46 : vector<4x32xf32>
    %48 = vector.extract_strided_slice %37 {offsets = [0, 64], sizes = [4, 32], strides = [1, 1]} : vector<4x128xf32> to vector<4x32xf32>
    %49 = vector.extract_strided_slice %37 {offsets = [0, 96], sizes = [4, 32], strides = [1, 1]} : vector<4x128xf32> to vector<4x32xf32>
    %cst_21 = arith.constant 5.000000e-01 : f32
    %50 = vector.broadcast %cst_21 : f32 to vector<4x32xf32>
    %51 = arith.mulf %50, %49 : vector<4x32xf32>
    %cst_22 = arith.constant 5.000000e-01 : f32
    %52 = vector.broadcast %cst_22 : f32 to vector<4x32xf32>
    %53 = arith.addf %51, %52 : vector<4x32xf32>
    %54 = arith.mulf %47, %31 : vector<4x32xf32>
    %55 = arith.mulf %42, %48 : vector<4x32xf32>
    %56 = arith.addf %54, %55 : vector<4x32xf32>
    %57 = math.tanh %56 : vector<4x32xf32>
    %58 = arith.mulf %53, %57 : vector<4x32xf32>
    %59 = vector.extract_strided_slice %5 {offsets = [8, 0], sizes = [4, 128], strides = [1, 1]} : vector<36x128xf32> to vector<4x128xf32>
    %cst_23 = arith.constant dense<0.000000e+00> : vector<4x128xf32>
    %60 = tpu.matmul %58, %6, %cst_23 {dimension_numbers = #tpu.dot_dimension_numbers<[1], [0], [0], [1], [0, 0, 1, 1], [], []>} : vector<4x32xf32>, vector<32x128xf32>, vector<4x128xf32> -> vector<4x128xf32>
    %61 = arith.addf %59, %60 : vector<4x128xf32>
    %62 = math.tanh %61 : vector<4x128xf32>
    %63 = vector.extract_strided_slice %62 {offsets = [0, 0], sizes = [4, 32], strides = [1, 1]} : vector<4x128xf32> to vector<4x32xf32>
    %cst_24 = arith.constant 5.000000e-01 : f32
    %64 = vector.broadcast %cst_24 : f32 to vector<4x32xf32>
    %65 = arith.mulf %64, %63 : vector<4x32xf32>
    %cst_25 = arith.constant 5.000000e-01 : f32
    %66 = vector.broadcast %cst_25 : f32 to vector<4x32xf32>
    %67 = arith.addf %65, %66 : vector<4x32xf32>
    %68 = vector.extract_strided_slice %62 {offsets = [0, 32], sizes = [4, 32], strides = [1, 1]} : vector<4x128xf32> to vector<4x32xf32>
    %cst_26 = arith.constant 5.000000e-01 : f32
    %69 = vector.broadcast %cst_26 : f32 to vector<4x32xf32>
    %70 = arith.mulf %69, %68 : vector<4x32xf32>
    %cst_27 = arith.constant 5.000000e-01 : f32
    %71 = vector.broadcast %cst_27 : f32 to vector<4x32xf32>
    %72 = arith.addf %70, %71 : vector<4x32xf32>
    %73 = vector.extract_strided_slice %62 {offsets = [0, 64], sizes = [4, 32], strides = [1, 1]} : vector<4x128xf32> to vector<4x32xf32>
    %74 = vector.extract_strided_slice %62 {offsets = [0, 96], sizes = [4, 32], strides = [1, 1]} : vector<4x128xf32> to vector<4x32xf32>
    %cst_28 = arith.constant 5.000000e-01 : f32
    %75 = vector.broadcast %cst_28 : f32 to vector<4x32xf32>
    %76 = arith.mulf %75, %74 : vector<4x32xf32>
    %cst_29 = arith.constant 5.000000e-01 : f32
    %77 = vector.broadcast %cst_29 : f32 to vector<4x32xf32>
    %78 = arith.addf %76, %77 : vector<4x32xf32>
    %79 = arith.mulf %72, %56 : vector<4x32xf32>
    %80 = arith.mulf %67, %73 : vector<4x32xf32>
    %81 = arith.addf %79, %80 : vector<4x32xf32>
    %82 = math.tanh %81 : vector<4x32xf32>
    %83 = arith.mulf %78, %82 : vector<4x32xf32>
    %84 = vector.extract_strided_slice %5 {offsets = [12, 0], sizes = [4, 128], strides = [1, 1]} : vector<36x128xf32> to vector<4x128xf32>
    %cst_30 = arith.constant dense<0.000000e+00> : vector<4x128xf32>
    %85 = tpu.matmul %83, %6, %cst_30 {dimension_numbers = #tpu.dot_dimension_numbers<[1], [0], [0], [1], [0, 0, 1, 1], [], []>} : vector<4x32xf32>, vector<32x128xf32>, vector<4x128xf32> -> vector<4x128xf32>
    %86 = arith.addf %84, %85 : vector<4x128xf32>
    %87 = math.tanh %86 : vector<4x128xf32>
    %88 = vector.extract_strided_slice %87 {offsets = [0, 0], sizes = [4, 32], strides = [1, 1]} : vector<4x128xf32> to vector<4x32xf32>
    %cst_31 = arith.constant 5.000000e-01 : f32
    %89 = vector.broadcast %cst_31 : f32 to vector<4x32xf32>
    %90 = arith.mulf %89, %88 : vector<4x32xf32>
    %cst_32 = arith.constant 5.000000e-01 : f32
    %91 = vector.broadcast %cst_32 : f32 to vector<4x32xf32>
    %92 = arith.addf %90, %91 : vector<4x32xf32>
    %93 = vector.extract_strided_slice %87 {offsets = [0, 32], sizes = [4, 32], strides = [1, 1]} : vector<4x128xf32> to vector<4x32xf32>
    %cst_33 = arith.constant 5.000000e-01 : f32
    %94 = vector.broadcast %cst_33 : f32 to vector<4x32xf32>
    %95 = arith.mulf %94, %93 : vector<4x32xf32>
    %cst_34 = arith.constant 5.000000e-01 : f32
    %96 = vector.broadcast %cst_34 : f32 to vector<4x32xf32>
    %97 = arith.addf %95, %96 : vector<4x32xf32>
    %98 = vector.extract_strided_slice %87 {offsets = [0, 64], sizes = [4, 32], strides = [1, 1]} : vector<4x128xf32> to vector<4x32xf32>
    %99 = vector.extract_strided_slice %87 {offsets = [0, 96], sizes = [4, 32], strides = [1, 1]} : vector<4x128xf32> to vector<4x32xf32>
    %cst_35 = arith.constant 5.000000e-01 : f32
    %100 = vector.broadcast %cst_35 : f32 to vector<4x32xf32>
    %101 = arith.mulf %100, %99 : vector<4x32xf32>
    %cst_36 = arith.constant 5.000000e-01 : f32
    %102 = vector.broadcast %cst_36 : f32 to vector<4x32xf32>
    %103 = arith.addf %101, %102 : vector<4x32xf32>
    %104 = arith.mulf %97, %81 : vector<4x32xf32>
    %105 = arith.mulf %92, %98 : vector<4x32xf32>
    %106 = arith.addf %104, %105 : vector<4x32xf32>
    %107 = math.tanh %106 : vector<4x32xf32>
    %108 = arith.mulf %103, %107 : vector<4x32xf32>
    %109 = vector.extract_strided_slice %5 {offsets = [16, 0], sizes = [4, 128], strides = [1, 1]} : vector<36x128xf32> to vector<4x128xf32>
    %cst_37 = arith.constant dense<0.000000e+00> : vector<4x128xf32>
    %110 = tpu.matmul %108, %6, %cst_37 {dimension_numbers = #tpu.dot_dimension_numbers<[1], [0], [0], [1], [0, 0, 1, 1], [], []>} : vector<4x32xf32>, vector<32x128xf32>, vector<4x128xf32> -> vector<4x128xf32>
    %111 = arith.addf %109, %110 : vector<4x128xf32>
    %112 = math.tanh %111 : vector<4x128xf32>
    %113 = vector.extract_strided_slice %112 {offsets = [0, 0], sizes = [4, 32], strides = [1, 1]} : vector<4x128xf32> to vector<4x32xf32>
    %cst_38 = arith.constant 5.000000e-01 : f32
    %114 = vector.broadcast %cst_38 : f32 to vector<4x32xf32>
    %115 = arith.mulf %114, %113 : vector<4x32xf32>
    %cst_39 = arith.constant 5.000000e-01 : f32
    %116 = vector.broadcast %cst_39 : f32 to vector<4x32xf32>
    %117 = arith.addf %115, %116 : vector<4x32xf32>
    %118 = vector.extract_strided_slice %112 {offsets = [0, 32], sizes = [4, 32], strides = [1, 1]} : vector<4x128xf32> to vector<4x32xf32>
    %cst_40 = arith.constant 5.000000e-01 : f32
    %119 = vector.broadcast %cst_40 : f32 to vector<4x32xf32>
    %120 = arith.mulf %119, %118 : vector<4x32xf32>
    %cst_41 = arith.constant 5.000000e-01 : f32
    %121 = vector.broadcast %cst_41 : f32 to vector<4x32xf32>
    %122 = arith.addf %120, %121 : vector<4x32xf32>
    %123 = vector.extract_strided_slice %112 {offsets = [0, 64], sizes = [4, 32], strides = [1, 1]} : vector<4x128xf32> to vector<4x32xf32>
    %124 = vector.extract_strided_slice %112 {offsets = [0, 96], sizes = [4, 32], strides = [1, 1]} : vector<4x128xf32> to vector<4x32xf32>
    %cst_42 = arith.constant 5.000000e-01 : f32
    %125 = vector.broadcast %cst_42 : f32 to vector<4x32xf32>
    %126 = arith.mulf %125, %124 : vector<4x32xf32>
    %cst_43 = arith.constant 5.000000e-01 : f32
    %127 = vector.broadcast %cst_43 : f32 to vector<4x32xf32>
    %128 = arith.addf %126, %127 : vector<4x32xf32>
    %129 = arith.mulf %122, %106 : vector<4x32xf32>
    %130 = arith.mulf %117, %123 : vector<4x32xf32>
    %131 = arith.addf %129, %130 : vector<4x32xf32>
    %132 = math.tanh %131 : vector<4x32xf32>
    %133 = arith.mulf %128, %132 : vector<4x32xf32>
    %134 = vector.extract_strided_slice %5 {offsets = [20, 0], sizes = [4, 128], strides = [1, 1]} : vector<36x128xf32> to vector<4x128xf32>
    %cst_44 = arith.constant dense<0.000000e+00> : vector<4x128xf32>
    %135 = tpu.matmul %133, %6, %cst_44 {dimension_numbers = #tpu.dot_dimension_numbers<[1], [0], [0], [1], [0, 0, 1, 1], [], []>} : vector<4x32xf32>, vector<32x128xf32>, vector<4x128xf32> -> vector<4x128xf32>
    %136 = arith.addf %134, %135 : vector<4x128xf32>
    %137 = math.tanh %136 : vector<4x128xf32>
    %138 = vector.extract_strided_slice %137 {offsets = [0, 0], sizes = [4, 32], strides = [1, 1]} : vector<4x128xf32> to vector<4x32xf32>
    %cst_45 = arith.constant 5.000000e-01 : f32
    %139 = vector.broadcast %cst_45 : f32 to vector<4x32xf32>
    %140 = arith.mulf %139, %138 : vector<4x32xf32>
    %cst_46 = arith.constant 5.000000e-01 : f32
    %141 = vector.broadcast %cst_46 : f32 to vector<4x32xf32>
    %142 = arith.addf %140, %141 : vector<4x32xf32>
    %143 = vector.extract_strided_slice %137 {offsets = [0, 32], sizes = [4, 32], strides = [1, 1]} : vector<4x128xf32> to vector<4x32xf32>
    %cst_47 = arith.constant 5.000000e-01 : f32
    %144 = vector.broadcast %cst_47 : f32 to vector<4x32xf32>
    %145 = arith.mulf %144, %143 : vector<4x32xf32>
    %cst_48 = arith.constant 5.000000e-01 : f32
    %146 = vector.broadcast %cst_48 : f32 to vector<4x32xf32>
    %147 = arith.addf %145, %146 : vector<4x32xf32>
    %148 = vector.extract_strided_slice %137 {offsets = [0, 64], sizes = [4, 32], strides = [1, 1]} : vector<4x128xf32> to vector<4x32xf32>
    %149 = vector.extract_strided_slice %137 {offsets = [0, 96], sizes = [4, 32], strides = [1, 1]} : vector<4x128xf32> to vector<4x32xf32>
    %cst_49 = arith.constant 5.000000e-01 : f32
    %150 = vector.broadcast %cst_49 : f32 to vector<4x32xf32>
    %151 = arith.mulf %150, %149 : vector<4x32xf32>
    %cst_50 = arith.constant 5.000000e-01 : f32
    %152 = vector.broadcast %cst_50 : f32 to vector<4x32xf32>
    %153 = arith.addf %151, %152 : vector<4x32xf32>
    %154 = arith.mulf %147, %131 : vector<4x32xf32>
    %155 = arith.mulf %142, %148 : vector<4x32xf32>
    %156 = arith.addf %154, %155 : vector<4x32xf32>
    %157 = math.tanh %156 : vector<4x32xf32>
    %158 = arith.mulf %153, %157 : vector<4x32xf32>
    %159 = vector.extract_strided_slice %5 {offsets = [24, 0], sizes = [4, 128], strides = [1, 1]} : vector<36x128xf32> to vector<4x128xf32>
    %cst_51 = arith.constant dense<0.000000e+00> : vector<4x128xf32>
    %160 = tpu.matmul %158, %6, %cst_51 {dimension_numbers = #tpu.dot_dimension_numbers<[1], [0], [0], [1], [0, 0, 1, 1], [], []>} : vector<4x32xf32>, vector<32x128xf32>, vector<4x128xf32> -> vector<4x128xf32>
    %161 = arith.addf %159, %160 : vector<4x128xf32>
    %162 = math.tanh %161 : vector<4x128xf32>
    %163 = vector.extract_strided_slice %162 {offsets = [0, 0], sizes = [4, 32], strides = [1, 1]} : vector<4x128xf32> to vector<4x32xf32>
    %cst_52 = arith.constant 5.000000e-01 : f32
    %164 = vector.broadcast %cst_52 : f32 to vector<4x32xf32>
    %165 = arith.mulf %164, %163 : vector<4x32xf32>
    %cst_53 = arith.constant 5.000000e-01 : f32
    %166 = vector.broadcast %cst_53 : f32 to vector<4x32xf32>
    %167 = arith.addf %165, %166 : vector<4x32xf32>
    %168 = vector.extract_strided_slice %162 {offsets = [0, 32], sizes = [4, 32], strides = [1, 1]} : vector<4x128xf32> to vector<4x32xf32>
    %cst_54 = arith.constant 5.000000e-01 : f32
    %169 = vector.broadcast %cst_54 : f32 to vector<4x32xf32>
    %170 = arith.mulf %169, %168 : vector<4x32xf32>
    %cst_55 = arith.constant 5.000000e-01 : f32
    %171 = vector.broadcast %cst_55 : f32 to vector<4x32xf32>
    %172 = arith.addf %170, %171 : vector<4x32xf32>
    %173 = vector.extract_strided_slice %162 {offsets = [0, 64], sizes = [4, 32], strides = [1, 1]} : vector<4x128xf32> to vector<4x32xf32>
    %174 = vector.extract_strided_slice %162 {offsets = [0, 96], sizes = [4, 32], strides = [1, 1]} : vector<4x128xf32> to vector<4x32xf32>
    %cst_56 = arith.constant 5.000000e-01 : f32
    %175 = vector.broadcast %cst_56 : f32 to vector<4x32xf32>
    %176 = arith.mulf %175, %174 : vector<4x32xf32>
    %cst_57 = arith.constant 5.000000e-01 : f32
    %177 = vector.broadcast %cst_57 : f32 to vector<4x32xf32>
    %178 = arith.addf %176, %177 : vector<4x32xf32>
    %179 = arith.mulf %172, %156 : vector<4x32xf32>
    %180 = arith.mulf %167, %173 : vector<4x32xf32>
    %181 = arith.addf %179, %180 : vector<4x32xf32>
    %182 = math.tanh %181 : vector<4x32xf32>
    %183 = arith.mulf %178, %182 : vector<4x32xf32>
    %184 = vector.extract_strided_slice %5 {offsets = [28, 0], sizes = [4, 128], strides = [1, 1]} : vector<36x128xf32> to vector<4x128xf32>
    %cst_58 = arith.constant dense<0.000000e+00> : vector<4x128xf32>
    %185 = tpu.matmul %183, %6, %cst_58 {dimension_numbers = #tpu.dot_dimension_numbers<[1], [0], [0], [1], [0, 0, 1, 1], [], []>} : vector<4x32xf32>, vector<32x128xf32>, vector<4x128xf32> -> vector<4x128xf32>
    %186 = arith.addf %184, %185 : vector<4x128xf32>
    %187 = math.tanh %186 : vector<4x128xf32>
    %188 = vector.extract_strided_slice %187 {offsets = [0, 0], sizes = [4, 32], strides = [1, 1]} : vector<4x128xf32> to vector<4x32xf32>
    %cst_59 = arith.constant 5.000000e-01 : f32
    %189 = vector.broadcast %cst_59 : f32 to vector<4x32xf32>
    %190 = arith.mulf %189, %188 : vector<4x32xf32>
    %cst_60 = arith.constant 5.000000e-01 : f32
    %191 = vector.broadcast %cst_60 : f32 to vector<4x32xf32>
    %192 = arith.addf %190, %191 : vector<4x32xf32>
    %193 = vector.extract_strided_slice %187 {offsets = [0, 32], sizes = [4, 32], strides = [1, 1]} : vector<4x128xf32> to vector<4x32xf32>
    %cst_61 = arith.constant 5.000000e-01 : f32
    %194 = vector.broadcast %cst_61 : f32 to vector<4x32xf32>
    %195 = arith.mulf %194, %193 : vector<4x32xf32>
    %cst_62 = arith.constant 5.000000e-01 : f32
    %196 = vector.broadcast %cst_62 : f32 to vector<4x32xf32>
    %197 = arith.addf %195, %196 : vector<4x32xf32>
    %198 = vector.extract_strided_slice %187 {offsets = [0, 64], sizes = [4, 32], strides = [1, 1]} : vector<4x128xf32> to vector<4x32xf32>
    %199 = vector.extract_strided_slice %187 {offsets = [0, 96], sizes = [4, 32], strides = [1, 1]} : vector<4x128xf32> to vector<4x32xf32>
    %cst_63 = arith.constant 5.000000e-01 : f32
    %200 = vector.broadcast %cst_63 : f32 to vector<4x32xf32>
    %201 = arith.mulf %200, %199 : vector<4x32xf32>
    %cst_64 = arith.constant 5.000000e-01 : f32
    %202 = vector.broadcast %cst_64 : f32 to vector<4x32xf32>
    %203 = arith.addf %201, %202 : vector<4x32xf32>
    %204 = arith.mulf %197, %181 : vector<4x32xf32>
    %205 = arith.mulf %192, %198 : vector<4x32xf32>
    %206 = arith.addf %204, %205 : vector<4x32xf32>
    %207 = math.tanh %206 : vector<4x32xf32>
    %208 = arith.mulf %203, %207 : vector<4x32xf32>
    %209 = vector.extract_strided_slice %5 {offsets = [32, 0], sizes = [4, 128], strides = [1, 1]} : vector<36x128xf32> to vector<4x128xf32>
    %cst_65 = arith.constant dense<0.000000e+00> : vector<4x128xf32>
    %210 = tpu.matmul %208, %6, %cst_65 {dimension_numbers = #tpu.dot_dimension_numbers<[1], [0], [0], [1], [0, 0, 1, 1], [], []>} : vector<4x32xf32>, vector<32x128xf32>, vector<4x128xf32> -> vector<4x128xf32>
    %211 = arith.addf %209, %210 : vector<4x128xf32>
    %212 = math.tanh %211 : vector<4x128xf32>
    %213 = vector.extract_strided_slice %212 {offsets = [0, 0], sizes = [4, 32], strides = [1, 1]} : vector<4x128xf32> to vector<4x32xf32>
    %cst_66 = arith.constant 5.000000e-01 : f32
    %214 = vector.broadcast %cst_66 : f32 to vector<4x32xf32>
    %215 = arith.mulf %214, %213 : vector<4x32xf32>
    %cst_67 = arith.constant 5.000000e-01 : f32
    %216 = vector.broadcast %cst_67 : f32 to vector<4x32xf32>
    %217 = arith.addf %215, %216 : vector<4x32xf32>
    %218 = vector.extract_strided_slice %212 {offsets = [0, 32], sizes = [4, 32], strides = [1, 1]} : vector<4x128xf32> to vector<4x32xf32>
    %cst_68 = arith.constant 5.000000e-01 : f32
    %219 = vector.broadcast %cst_68 : f32 to vector<4x32xf32>
    %220 = arith.mulf %219, %218 : vector<4x32xf32>
    %cst_69 = arith.constant 5.000000e-01 : f32
    %221 = vector.broadcast %cst_69 : f32 to vector<4x32xf32>
    %222 = arith.addf %220, %221 : vector<4x32xf32>
    %223 = vector.extract_strided_slice %212 {offsets = [0, 64], sizes = [4, 32], strides = [1, 1]} : vector<4x128xf32> to vector<4x32xf32>
    %224 = vector.extract_strided_slice %212 {offsets = [0, 96], sizes = [4, 32], strides = [1, 1]} : vector<4x128xf32> to vector<4x32xf32>
    %cst_70 = arith.constant 5.000000e-01 : f32
    %225 = vector.broadcast %cst_70 : f32 to vector<4x32xf32>
    %226 = arith.mulf %225, %224 : vector<4x32xf32>
    %cst_71 = arith.constant 5.000000e-01 : f32
    %227 = vector.broadcast %cst_71 : f32 to vector<4x32xf32>
    %228 = arith.addf %226, %227 : vector<4x32xf32>
    %229 = arith.mulf %222, %206 : vector<4x32xf32>
    %230 = arith.mulf %217, %223 : vector<4x32xf32>
    %231 = arith.addf %229, %230 : vector<4x32xf32>
    %232 = math.tanh %231 : vector<4x32xf32>
    %233 = arith.mulf %228, %232 : vector<4x32xf32>
    %c0_72 = arith.constant 0 : index
    %c0_73 = arith.constant 0 : index
    %234 = vector.load %arg6[%c0_72, %c0_73] : memref<32x8xf32, #tpu.memory_space<vmem>>, vector<32x8xf32>
    %cst_74 = arith.constant dense<0.000000e+00> : vector<4x8xf32>
    %235 = tpu.matmul %233, %234, %cst_74 {dimension_numbers = #tpu.dot_dimension_numbers<[1], [0], [0], [1], [0, 0, 1, 1], [], []>} : vector<4x32xf32>, vector<32x8xf32>, vector<4x8xf32> -> vector<4x8xf32>
    %c0_75 = arith.constant 0 : index
    %c0_76 = arith.constant 0 : index
    %236 = vector.load %arg2[%c0_75, %c0_76] : memref<4x32xf32, #tpu.memory_space<vmem>>, vector<4x32xf32>
    %c0_77 = arith.constant 0 : index
    %c0_78 = arith.constant 0 : index
    %237 = vector.load %arg7[%c0_77, %c0_78] : memref<32x8xf32, #tpu.memory_space<vmem>>, vector<32x8xf32>
    %cst_79 = arith.constant dense<0.000000e+00> : vector<4x8xf32>
    %238 = tpu.matmul %236, %237, %cst_79 {dimension_numbers = #tpu.dot_dimension_numbers<[1], [0], [0], [1], [0, 0, 1, 1], [], []>} : vector<4x32xf32>, vector<32x8xf32>, vector<4x8xf32> -> vector<4x8xf32>
    %239 = arith.addf %235, %238 : vector<4x8xf32>
    %c0_80 = arith.constant 0 : index
    %c0_81 = arith.constant 0 : index
    %240 = vector.load %arg8[%c0_80, %c0_81] : memref<1x8xf32, #tpu.memory_space<vmem>>, vector<1x8xf32>
    %241 = vector.broadcast %240 : vector<1x8xf32> to vector<4x8xf32>
    %242 = arith.addf %239, %241 : vector<4x8xf32>
    %c0_82 = arith.constant 0 : index
    %c0_83 = arith.constant 0 : index
    %243 = vector.load %arg9[%c0_82, %c0_83] : memref<4x8xf32, #tpu.memory_space<vmem>>, vector<4x8xf32>
    tpu.vector_store %arg9[%c0_82, %c0_83], %242 {strides = array<i32>} : memref<4x8xf32, #tpu.memory_space<vmem>>, vector<4x8xf32>,
    return
  }
  func.func @transform_0(%arg0: i32) -> (i32, i32) {
    %c0_i32 = arith.constant 0 : i32
    %c0_i32_0 = arith.constant 0 : i32
    %c0_i32_1 = arith.constant 0 : i32
    return %c0_i32, %c0_i32_0 : i32, i32
  }
  func.func @transform_1(%arg0: i32) -> (i32, i32) {
    %c0_i32 = arith.constant 0 : i32
    %c0_i32_0 = arith.constant 0 : i32
    %c0_i32_1 = arith.constant 0 : i32
    return %c0_i32, %c0_i32_0 : i32, i32
  }
  func.func @transform_2(%arg0: i32) -> (i32, i32) {
    %c0_i32 = arith.constant 0 : i32
    %c0_i32_0 = arith.constant 0 : i32
    %c0_i32_1 = arith.constant 0 : i32
    return %c0_i32, %c0_i32_0 : i32, i32
  }
  func.func @transform_3(%arg0: i32) -> (i32, i32) {
    %c0_i32 = arith.constant 0 : i32
    %c0_i32_0 = arith.constant 0 : i32
    %c0_i32_1 = arith.constant 0 : i32
    return %c0_i32, %c0_i32_0 : i32, i32
  }
  func.func @transform_4(%arg0: i32) -> (i32, i32) {
    %c0_i32 = arith.constant 0 : i32
    %c0_i32_0 = arith.constant 0 : i32
    %c0_i32_1 = arith.constant 0 : i32
    return %c0_i32, %c0_i32_0 : i32, i32
  }
  func.func @transform_5(%arg0: i32) -> (i32, i32) {
    %c0_i32 = arith.constant 0 : i32
    %c0_i32_0 = arith.constant 0 : i32
    %c0_i32_1 = arith.constant 0 : i32
    return %c0_i32, %c0_i32_0 : i32, i32
  }
  func.func @transform_6(%arg0: i32) -> (i32, i32) {
    %c0_i32 = arith.constant 0 : i32
    %c0_i32_0 = arith.constant 0 : i32
    %c0_i32_1 = arith.constant 0 : i32
    return %c0_i32, %c0_i32_0 : i32, i32
  }
  func.func @transform_7(%arg0: i32) -> (i32, i32) {
    %c0_i32 = arith.constant 0 : i32
    %c0_i32_0 = arith.constant 0 : i32
    %c0_i32_1 = arith.constant 0 : i32
    return %c0_i32, %c0_i32_0 : i32, i32
  }
  func.func @transform_8(%arg0: i32) -> (i32, i32) {
    %c0_i32 = arith.constant 0 : i32
    %c0_i32_0 = arith.constant 0 : i32
    %c0_i32_1 = arith.constant 0 : i32
    return %c0_i32, %c0_i32_0 : i32, i32
  }
}

</mosaic_0001>

<llo_original>
// kernel: tpu_custom_call.1
$region0: #{tpu_custom_call.1}
  #allocation0 [shape = 'u32[]', space=smem, size = 0x4, offset = 0x4, fixed_abs, tag = 'smem constant byte address 0x4 - core index']
  #allocation1 [shape = 'u32[144,128]{1,0:T(1,128)}', space=vmem, size = 0x12000, scoped, tag = 'internal scratch']
  %s0 = inlined_call_operand.vmem [shape: f32[36,2], index: 0, kind: input, shape index: {}]
  %s1 = inlined_call_operand.vmem [shape: f32[4,32], index: 1, kind: input, shape index: {}]
  %s2 = inlined_call_operand.vmem [shape: f32[2,128], index: 2, kind: input, shape index: {}]
  %s3 = inlined_call_operand.vmem [shape: f32[32,128], index: 3, kind: input, shape index: {}]
  %s4 = inlined_call_operand.vmem [shape: f32[1,128], index: 4, kind: input, shape index: {}]
  %s5 = inlined_call_operand.vmem [shape: f32[32,8], index: 5, kind: input, shape index: {}]
  %s6 = inlined_call_operand.vmem [shape: f32[32,8], index: 6, kind: input, shape index: {}]
  %s7 = inlined_call_operand.vmem [shape: f32[1,8], index: 7, kind: input, shape index: {}]
  %s8 = inlined_call_operand.hbm [shape: f32[4,8], index: 8, kind: output, shape index: {}]
  %s9 = sld [smem:[#allocation0]]
  $region42: #{tpu_custom_call.1} parent=0
    _
  %s11 = ssub.s32 1, %s9
  %s12 = scalar_select 0, %s11, %s9
  $region1: #{tpu_custom_call.1} parent=0
    #allocation2 [shape = 'u8[2048]{0}', space=vmem, size = 0x800, scoped, tag = 'output window, operand 0, single buffered']
    #allocation3 [shape = 's32[1]{0}', space=sflag, size = 0x4, scoped, tag = 'scoped memory for tpu_custom_call.1']
    %13 = vsyncpa [#allocation3], 0
    // Predicated region
    $region2: #{tpu_custom_call.1} parent=1 // pred_check
      _
    $region3: #{tpu_custom_call.1} parent=1 // pred_check_branch
      %15 = sbr.rel (0) target = $region5
    $region4: #{tpu_custom_call.1} parent=1 // pred_region
      _
    $region5: #{tpu_custom_call.1} parent=1 // pred_fallthru
      _
    // Predicated region
    $region6: #{tpu_custom_call.1} parent=1 // pred_check
      _
    $region7: #{tpu_custom_call.1} parent=1 // pred_check_branch
      %17 = sbr.rel (0) target = $region9
    $region8: #{tpu_custom_call.1} parent=1 // pred_region
      _
    $region9: #{tpu_custom_call.1} parent=1 // pred_fallthru
      _
    // Predicated region
    $region10: #{tpu_custom_call.1} parent=1 // pred_check
      _
    $region11: #{tpu_custom_call.1} parent=1 // pred_check_branch
      %19 = sbr.rel (0) target = $region13
    $region12: #{tpu_custom_call.1} parent=1 // pred_region
      _
    $region13: #{tpu_custom_call.1} parent=1 // pred_fallthru
      _
    // Predicated region
    $region14: #{tpu_custom_call.1} parent=1 // pred_check
      _
    $region15: #{tpu_custom_call.1} parent=1 // pred_check_branch
      %21 = sbr.rel (0) target = $region17
    $region16: #{tpu_custom_call.1} parent=1 // pred_region
      _
    $region17: #{tpu_custom_call.1} parent=1 // pred_fallthru
      _
    // Predicated region
    $region18: #{tpu_custom_call.1} parent=1 // pred_check
      _
    $region19: #{tpu_custom_call.1} parent=1 // pred_check_branch
      %23 = sbr.rel (0) target = $region21
    $region20: #{tpu_custom_call.1} parent=1 // pred_region
      _
    $region21: #{tpu_custom_call.1} parent=1 // pred_fallthru
      _
    // Predicated region
    $region22: #{tpu_custom_call.1} parent=1 // pred_check
      _
    $region23: #{tpu_custom_call.1} parent=1 // pred_check_branch
      %25 = sbr.rel (0) target = $region25
    $region24: #{tpu_custom_call.1} parent=1 // pred_region
      _
    $region25: #{tpu_custom_call.1} parent=1 // pred_fallthru
      _
    // Predicated region
    $region26: #{tpu_custom_call.1} parent=1 // pred_check
      _
    $region27: #{tpu_custom_call.1} parent=1 // pred_check_branch
      %27 = sbr.rel (0) target = $region29
    $region28: #{tpu_custom_call.1} parent=1 // pred_region
      _
    $region29: #{tpu_custom_call.1} parent=1 // pred_fallthru
      _
    // Predicated region
    $region30: #{tpu_custom_call.1} parent=1 // pred_check
      _
    $region31: #{tpu_custom_call.1} parent=1 // pred_check_branch
      %29 = sbr.rel (0) target = $region33
    $region32: #{tpu_custom_call.1} parent=1 // pred_region
      _
    $region33: #{tpu_custom_call.1} parent=1 // pred_fallthru
      _
    %v30 = vld [vmem:[%s0] sm:$0xff]
    %v31 = vld [vmem:[%s0 + $0x8] sm:$0xff]
    %v32 = vld [vmem:[%s0 + $0x10] sm:$0xff]
    %v33 = vld [vmem:[%s0 + $0x18] sm:$0xff]
    %v34 = vld [vmem:[%s0 + $0x20] sm:$0xf]
    %v35 = vld [vmem:[%s2] sm:$0x3]
    %v36 = vld [vmem:[%s4] sm:$0x1]
    %v38 = vlaneseq
    %v39 = vshrl.u32 %v38, 7
    %v40 = vsub.s32 0, %v39
    %v41 = vrot.slane %v36, %v40
    %vm43 = vcmask 15360
    %v45 = vsel %vm43, %v30, 0
    %v48 = vsel %vm43, %v31, 0
    %v51 = vsel %vm43, %v32, 0
    %v54 = vsel %vm43, %v33, 0
    %v57 = vsel %vm43, %v34, 0
    %vm59 = vcmask 1041408
    %v61 = vsel %vm59, %v35, 0
    %63 = vmatprep.subr.mxu0 0.0
    %64 = vmatpush1.msra.mxu0 %v61
    %65 = vmatprep.subr.mxu0 0.0
    %66 = vmatpush1.msra.mxu0 0.0
    %67 = vmatprep.subr.mxu0 0.0
    %68 = vmatpush1.msra.mxu0 0.0
    %69 = vmatprep.subr.mxu0 0.0
    %70 = vmatpush1.msra.mxu0 0.0
    %71 = vmatprep.subr.mxu0 0.0
    %72 = vmatpush1.msra.mxu0 0.0
    %73 = vmatprep.subr.mxu0 0.0
    %74 = vmatpush1.msra.mxu0 0.0
    %75 = vmatprep.subr.mxu0 0.0
    %76 = vmatpush1.msra.mxu0 0.0
    %77 = vmatprep.subr.mxu0 0.0
    %78 = vmatpush1.msra.mxu0 0.0
    %79 = vmatprep.subr.mxu0 0.0
    %80 = vmatpush1.msra.mxu0 0.0
    %81 = vmatprep.subr.mxu0 0.0
    %82 = vmatpush1.msra.mxu0 0.0
    %83 = vmatprep.subr.mxu0 0.0
    %84 = vmatpush1.msra.mxu0 0.0
    %85 = vmatprep.subr.mxu0 0.0
    %86 = vmatpush1.msra.mxu0 0.0
    %87 = vmatprep.subr.mxu0 0.0
    %88 = vmatpush1.msra.mxu0 0.0
    %89 = vmatprep.subr.mxu0 0.0
    %90 = vmatpush1.msra.mxu0 0.0
    %91 = vmatprep.subr.mxu0 0.0
    %92 = vmatpush1.msra.mxu0 0.0
    %93 = vmatprep.subr.mxu0 0.0
    %94 = vmatpush1.msra.mxu0 0.0
    %95 = vmatprep.subr.mxu0 0.0
    %96 = vmatpush1.msra.mxu0 0.0
    %97 = vmatprep.subr.mxu0 0.0
    %98 = vmatpush1.msra.mxu0 0.0
    %99 = vmatprep.subr.mxu0 0.0
    %100 = vmatpush1.msra.mxu0 0.0
    %101 = vmatprep.subr.mxu0 0.0
    %102 = vmatpush1.msra.mxu0 0.0
    %103 = vmatprep.subr.mxu0 0.0
    %104 = vmatpush1.msra.mxu0 0.0
    %105 = vmatprep.subr.mxu0 0.0
    %106 = vmatpush1.msra.mxu0 0.0
    %107 = vmatprep.subr.mxu0 0.0
    %108 = vmatpush1.msra.mxu0 0.0
    %109 = vmatprep.subr.mxu0 0.0
    %110 = vmatpush1.msra.mxu0 0.0
    %111 = vmatprep.subr.mxu0 0.0
    %112 = vmatpush1.msra.mxu0 0.0
    %113 = vmatprep.subr.mxu0 0.0
    %114 = vmatpush1.msra.mxu0 0.0
    %115 = vmatprep.subr.mxu0 0.0
    %116 = vmatpush1.msra.mxu0 0.0
    %117 = vmatprep.subr.mxu0 0.0
    %118 = vmatpush1.msra.mxu0 0.0
    %119 = vmatprep.subr.mxu0 0.0
    %120 = vmatpush1.msra.mxu0 0.0
    %121 = vmatprep.subr.mxu0 0.0
    %122 = vmatpush1.msra.mxu0 0.0
    %123 = vmatprep.subr.mxu0 0.0
    %124 = vmatpush1.msra.mxu0 0.0
    %125 = vmatprep.subr.mxu0 0.0
    %126 = vmatpush1.msra.mxu0 0.0
    %127 = vmatprep.mubr.f32.mxu0 0.0
    %128 = vmatmul.mubr.f32.gmra.mrb[0].mxu0 %v45
    %v129 = vpop.f32.mrb[0].mxu0
    %v130 = vadd.f32 %v41, %v129
    %v131 = vpop.f32.mrb[0].mxu0
    %132 = vmatprep.mubr.f32.mxu0 0.0
    %133 = vmatmul.mubr.f32.gmra.mrb[0].mxu0 %v48
    %v134 = vpop.f32.mrb[0].mxu0
    %v135 = vadd.f32 %v41, %v134
    %v136 = vpop.f32.mrb[0].mxu0
    %137 = vmatprep.mubr.f32.mxu0 0.0
    %138 = vmatmul.mubr.f32.gmra.mrb[0].mxu0 %v51
    %v139 = vpop.f32.mrb[0].mxu0
    %v140 = vadd.f32 %v41, %v139
    %v141 = vpop.f32.mrb[0].mxu0
    %142 = vmatprep.mubr.f32.mxu0 0.0
    %143 = vmatmul.mubr.f32.gmra.mrb[0].mxu0 %v54
    %v144 = vpop.f32.mrb[0].mxu0
    %v145 = vadd.f32 %v41, %v144
    %v146 = vpop.f32.mrb[0].mxu0
    %147 = vmatprep.mubr.f32.mxu0 0.0
    %148 = vmatmul.mubr.f32.gmra.mrb[0].mxu0 %v57
    %v149 = vpop.f32.mrb[0].mxu0
    %v150 = vadd.f32 %v41, %v149
    %v151 = vpop.f32.mrb[0].mxu0
    %152 = vdwg.mxu0
    %v153 = vld [vmem:[%s3] sm:$0xff]
    %v154 = vld [vmem:[%s3 + $0x8] sm:$0xff]
    %v155 = vld [vmem:[%s3 + $0x10] sm:$0xff]
    %v156 = vld [vmem:[%s3 + $0x18] sm:$0xff]
    %vm157 = vcmask 261120
    %v159 = vsel %vm157, 0.0, 0
    %161 = vmatprep.subr.mxu0 0.0
    %162 = vmatpush1.msra.mxu0 %v153
    %163 = vmatprep.subr.mxu0 0.0
    %164 = vmatpush1.msra.mxu0 %v154
    %165 = vmatprep.subr.mxu0 0.0
    %166 = vmatpush1.msra.mxu0 %v155
    %167 = vmatprep.subr.mxu0 0.0
    %168 = vmatpush1.msra.mxu0 %v156
    %169 = vmatprep.subr.mxu0 0.0
    %170 = vmatpush1.msra.mxu0 0.0
    %171 = vmatprep.subr.mxu0 0.0
    %172 = vmatpush1.msra.mxu0 0.0
    %173 = vmatprep.subr.mxu0 0.0
    %174 = vmatpush1.msra.mxu0 0.0
    %175 = vmatprep.subr.mxu0 0.0
    %176 = vmatpush1.msra.mxu0 0.0
    %177 = vmatprep.subr.mxu0 0.0
    %178 = vmatpush1.msra.mxu0 0.0
    %179 = vmatprep.subr.mxu0 0.0
    %180 = vmatpush1.msra.mxu0 0.0
    %181 = vmatprep.subr.mxu0 0.0
    %182 = vmatpush1.msra.mxu0 0.0
    %183 = vmatprep.subr.mxu0 0.0
    %184 = vmatpush1.msra.mxu0 0.0
    %185 = vmatprep.subr.mxu0 0.0
    %186 = vmatpush1.msra.mxu0 0.0
    %187 = vmatprep.subr.mxu0 0.0
    %188 = vmatpush1.msra.mxu0 0.0
    %189 = vmatprep.subr.mxu0 0.0
    %190 = vmatpush1.msra.mxu0 0.0
    %191 = vmatprep.subr.mxu0 0.0
    %192 = vmatpush1.msra.mxu0 0.0
    %193 = vmatprep.subr.mxu0 0.0
    %194 = vmatpush1.msra.mxu0 0.0
    %195 = vmatprep.subr.mxu0 0.0
    %196 = vmatpush1.msra.mxu0 0.0
    %197 = vmatprep.subr.mxu0 0.0
    %198 = vmatpush1.msra.mxu0 0.0
    %199 = vmatprep.subr.mxu0 0.0
    %200 = vmatpush1.msra.mxu0 0.0
    %201 = vmatprep.subr.mxu0 0.0
    %202 = vmatpush1.msra.mxu0 0.0
    %203 = vmatprep.subr.mxu0 0.0
    %204 = vmatpush1.msra.mxu0 0.0
    %205 = vmatprep.subr.mxu0 0.0
    %206 = vmatpush1.msra.mxu0 0.0
    %207 = vmatprep.subr.mxu0 0.0
    %208 = vmatpush1.msra.mxu0 0.0
    %209 = vmatprep.subr.mxu0 0.0
    %210 = vmatpush1.msra.mxu0 0.0
    %211 = vmatprep.subr.mxu0 0.0
    %212 = vmatpush1.msra.mxu0 0.0
    %213 = vmatprep.subr.mxu0 0.0
    %214 = vmatpush1.msra.mxu0 0.0
    %215 = vmatprep.subr.mxu0 0.0
    %216 = vmatpush1.msra.mxu0 0.0
    %217 = vmatprep.subr.mxu0 0.0
    %218 = vmatpush1.msra.mxu0 0.0
    %219 = vmatprep.subr.mxu0 0.0
    %220 = vmatpush1.msra.mxu0 0.0
    %221 = vmatprep.subr.mxu0 0.0
    %222 = vmatpush1.msra.mxu0 0.0
    %223 = vmatprep.subr.mxu0 0.0
    %224 = vmatpush1.msra.mxu0 0.0
    %225 = vmatprep.mubr.f32.mxu0 0.0
    %226 = vmatmul.mubr.f32.gmra.mrb[0].mxu0 %v159
    %v227 = vpop.f32.mrb[0].mxu0
    %v228 = vadd.f32 0.0, %v227
    %v229 = vpop.f32.mrb[0].mxu0
    %230 = vdwg.mxu0
    %v231 = vadd.f32 %v130, %v228
    %v232 = vtanh.pop %v231
    %v233 = vmul.f32 %v232, 0.5
    %v234 = vadd.f32 %v233, 0.5
    %v235 = vmul.f32 %v234, 0.0
    %237 = vrot.lane.b32.xlu0 %v232, 64
    %v238 = vpop.permute.xlu0 %237
    %v240 = vmul.f32 %v234, %v238
    %242 = vrot.lane.b32.xlu0 %v240, 32
    %v243 = vpop.permute.xlu0 %242
    %v245 = vadd.f32 %v235, %v243
    %v246 = vtanh.pop %v245
    %248 = vrot.lane.b32.xlu0 %v246, 64
    %v249 = vpop.permute.xlu0 %248
    %v251 = vmul.f32 %v234, %v249
    %253 = vrot.lane.b32.xlu0 %v251, 32
    %v254 = vpop.permute.xlu0 %253
    %v255 = vsel %vm157, %v254, 0
    %257 = vmatprep.subr.mxu0 0.0
    %258 = vmatpush1.msra.mxu0 %v153
    %259 = vmatprep.subr.mxu0 0.0
    %260 = vmatpush1.msra.mxu0 %v154
    %261 = vmatprep.subr.mxu0 0.0
    %262 = vmatpush1.msra.mxu0 %v155
    %263 = vmatprep.subr.mxu0 0.0
    %264 = vmatpush1.msra.mxu0 %v156
    %265 = vmatprep.subr.mxu0 0.0
    %266 = vmatpush1.msra.mxu0 0.0
    %267 = vmatprep.subr.mxu0 0.0
    %268 = vmatpush1.msra.mxu0 0.0
    %269 = vmatprep.subr.mxu0 0.0
    %270 = vmatpush1.msra.mxu0 0.0
    %271 = vmatprep.subr.mxu0 0.0
    %272 = vmatpush1.msra.mxu0 0.0
    %273 = vmatprep.subr.mxu0 0.0
    %274 = vmatpush1.msra.mxu0 0.0
    %275 = vmatprep.subr.mxu0 0.0
    %276 = vmatpush1.msra.mxu0 0.0
    %277 = vmatprep.subr.mxu0 0.0
    %278 = vmatpush1.msra.mxu0 0.0
    %279 = vmatprep.subr.mxu0 0.0
    %280 = vmatpush1.msra.mxu0 0.0
    %281 = vmatprep.subr.mxu0 0.0
    %282 = vmatpush1.msra.mxu0 0.0
    %283 = vmatprep.subr.mxu0 0.0
    %284 = vmatpush1.msra.mxu0 0.0
    %285 = vmatprep.subr.mxu0 0.0
    %286 = vmatpush1.msra.mxu0 0.0
    %287 = vmatprep.subr.mxu0 0.0
    %288 = vmatpush1.msra.mxu0 0.0
    %289 = vmatprep.subr.mxu0 0.0
    %290 = vmatpush1.msra.mxu0 0.0
    %291 = vmatprep.subr.mxu0 0.0
    %292 = vmatpush1.msra.mxu0 0.0
    %293 = vmatprep.subr.mxu0 0.0
    %294 = vmatpush1.msra.mxu0 0.0
    %295 = vmatprep.subr.mxu0 0.0
    %296 = vmatpush1.msra.mxu0 0.0
    %297 = vmatprep.subr.mxu0 0.0
    %298 = vmatpush1.msra.mxu0 0.0
    %299 = vmatprep.subr.mxu0 0.0
    %300 = vmatpush1.msra.mxu0 0.0
    %301 = vmatprep.subr.mxu0 0.0
    %302 = vmatpush1.msra.mxu0 0.0
    %303 = vmatprep.subr.mxu0 0.0
    %304 = vmatpush1.msra.mxu0 0.0
    %305 = vmatprep.subr.mxu0 0.0
    %306 = vmatpush1.msra.mxu0 0.0
    %307 = vmatprep.subr.mxu0 0.0
    %308 = vmatpush1.msra.mxu0 0.0
    %309 = vmatprep.subr.mxu0 0.0
    %310 = vmatpush1.msra.mxu0 0.0
    %311 = vmatprep.subr.mxu0 0.0
    %312 = vmatpush1.msra.mxu0 0.0
    %313 = vmatprep.subr.mxu0 0.0
    %314 = vmatpush1.msra.mxu0 0.0
    %315 = vmatprep.subr.mxu0 0.0
    %316 = vmatpush1.msra.mxu0 0.0
    %317 = vmatprep.subr.mxu0 0.0
    %318 = vmatpush1.msra.mxu0 0.0
    %319 = vmatprep.subr.mxu0 0.0
    %320 = vmatpush1.msra.mxu0 0.0
    %321 = vmatprep.mubr.f32.mxu0 0.0
    %322 = vmatmul.mubr.f32.gmra.mrb[0].mxu0 %v255
    %v323 = vpop.f32.mrb[0].mxu0
    %v324 = vadd.f32 0.0, %v323
    %v325 = vpop.f32.mrb[0].mxu0
    %326 = vdwg.mxu0
    %v328 = vrot.slane %v324, 4
    %v330 = vadd.f32 %v130, %v328
    %v331 = vtanh.pop %v330
    %v332 = vmul.f32 %v331, 0.5
    %v333 = vadd.f32 %v332, 0.5
    %v335 = vrot.slane %v245, 4
    %v337 = vmul.f32 %v333, %v335
    %339 = vrot.lane.b32.xlu0 %v331, 64
    %v340 = vpop.permute.xlu0 %339
    %v342 = vmul.f32 %v333, %v340
    %344 = vrot.lane.b32.xlu0 %v342, 32
    %v345 = vpop.permute.xlu0 %344
    %v347 = vadd.f32 %v337, %v345
    %v348 = vtanh.pop %v347
    %350 = vrot.lane.b32.xlu0 %v348, 64
    %v351 = vpop.permute.xlu0 %350
    %v353 = vmul.f32 %v333, %v351
    %v355 = vrot.slane %v353, 4
    %356 = vrot.lane.b32.xlu0 %v355, 32
    %v357 = vpop.permute.xlu0 %356
    %v358 = vsel %vm157, %v357, 0
    %360 = vmatprep.subr.mxu0 0.0
    %361 = vmatpush1.msra.mxu0 %v153
    %362 = vmatprep.subr.mxu0 0.0
    %363 = vmatpush1.msra.mxu0 %v154
    %364 = vmatprep.subr.mxu0 0.0
    %365 = vmatpush1.msra.mxu0 %v155
    %366 = vmatprep.subr.mxu0 0.0
    %367 = vmatpush1.msra.mxu0 %v156
    %368 = vmatprep.subr.mxu0 0.0
    %369 = vmatpush1.msra.mxu0 0.0
    %370 = vmatprep.subr.mxu0 0.0
    %371 = vmatpush1.msra.mxu0 0.0
    %372 = vmatprep.subr.mxu0 0.0
    %373 = vmatpush1.msra.mxu0 0.0
    %374 = vmatprep.subr.mxu0 0.0
    %375 = vmatpush1.msra.mxu0 0.0
    %376 = vmatprep.subr.mxu0 0.0
    %377 = vmatpush1.msra.mxu0 0.0
    %378 = vmatprep.subr.mxu0 0.0
    %379 = vmatpush1.msra.mxu0 0.0
    %380 = vmatprep.subr.mxu0 0.0
    %381 = vmatpush1.msra.mxu0 0.0
    %382 = vmatprep.subr.mxu0 0.0
    %383 = vmatpush1.msra.mxu0 0.0
    %384 = vmatprep.subr.mxu0 0.0
    %385 = vmatpush1.msra.mxu0 0.0
    %386 = vmatprep.subr.mxu0 0.0
    %387 = vmatpush1.msra.mxu0 0.0
    %388 = vmatprep.subr.mxu0 0.0
    %389 = vmatpush1.msra.mxu0 0.0
    %390 = vmatprep.subr.mxu0 0.0
    %391 = vmatpush1.msra.mxu0 0.0
    %392 = vmatprep.subr.mxu0 0.0
    %393 = vmatpush1.msra.mxu0 0.0
    %394 = vmatprep.subr.mxu0 0.0
    %395 = vmatpush1.msra.mxu0 0.0
    %396 = vmatprep.subr.mxu0 0.0
    %397 = vmatpush1.msra.mxu0 0.0
    %398 = vmatprep.subr.mxu0 0.0
    %399 = vmatpush1.msra.mxu0 0.0
    %400 = vmatprep.subr.mxu0 0.0
    %401 = vmatpush1.msra.mxu0 0.0
    %402 = vmatprep.subr.mxu0 0.0
    %403 = vmatpush1.msra.mxu0 0.0
    %404 = vmatprep.subr.mxu0 0.0
    %405 = vmatpush1.msra.mxu0 0.0
    %406 = vmatprep.subr.mxu0 0.0
    %407 = vmatpush1.msra.mxu0 0.0
    %408 = vmatprep.subr.mxu0 0.0
    %409 = vmatpush1.msra.mxu0 0.0
    %410 = vmatprep.subr.mxu0 0.0
    %411 = vmatpush1.msra.mxu0 0.0
    %412 = vmatprep.subr.mxu0 0.0
    %413 = vmatpush1.msra.mxu0 0.0
    %414 = vmatprep.subr.mxu0 0.0
    %415 = vmatpush1.msra.mxu0 0.0
    %416 = vmatprep.subr.mxu0 0.0
    %417 = vmatpush1.msra.mxu0 0.0
    %418 = vmatprep.subr.mxu0 0.0
    %419 = vmatpush1.msra.mxu0 0.0
    %420 = vmatprep.subr.mxu0 0.0
    %421 = vmatpush1.msra.mxu0 0.0
    %422 = vmatprep.subr.mxu0 0.0
    %423 = vmatpush1.msra.mxu0 0.0
    %424 = vmatprep.mubr.f32.mxu0 0.0
    %425 = vmatmul.mubr.f32.gmra.mrb[0].mxu0 %v358
    %v426 = vpop.f32.mrb[0].mxu0
    %v427 = vadd.f32 0.0, %v426
    %v428 = vpop.f32.mrb[0].mxu0
    %429 = vdwg.mxu0
    %v430 = vadd.f32 %v135, %v427
    %v431 = vtanh.pop %v430
    %v432 = vmul.f32 %v431, 0.5
    %v433 = vadd.f32 %v432, 0.5
    %v435 = vrot.slane %v347, 4
    %v437 = vmul.f32 %v433, %v435
    %439 = vrot.lane.b32.xlu0 %v431, 64
    %v440 = vpop.permute.xlu0 %439
    %v442 = vmul.f32 %v433, %v440
    %444 = vrot.lane.b32.xlu0 %v442, 32
    %v445 = vpop.permute.xlu0 %444
    %v447 = vadd.f32 %v437, %v445
    %v448 = vtanh.pop %v447
    %450 = vrot.lane.b32.xlu0 %v448, 64
    %v451 = vpop.permute.xlu0 %450
    %v453 = vmul.f32 %v433, %v451
    %455 = vrot.lane.b32.xlu0 %v453, 32
    %v456 = vpop.permute.xlu0 %455
    %v457 = vsel %vm157, %v456, 0
    %459 = vmatprep.subr.mxu0 0.0
    %460 = vmatpush1.msra.mxu0 %v153
    %461 = vmatprep.subr.mxu0 0.0
    %462 = vmatpush1.msra.mxu0 %v154
    %463 = vmatprep.subr.mxu0 0.0
    %464 = vmatpush1.msra.mxu0 %v155
    %465 = vmatprep.subr.mxu0 0.0
    %466 = vmatpush1.msra.mxu0 %v156
    %467 = vmatprep.subr.mxu0 0.0
    %468 = vmatpush1.msra.mxu0 0.0
    %469 = vmatprep.subr.mxu0 0.0
    %470 = vmatpush1.msra.mxu0 0.0
    %471 = vmatprep.subr.mxu0 0.0
    %472 = vmatpush1.msra.mxu0 0.0
    %473 = vmatprep.subr.mxu0 0.0
    %474 = vmatpush1.msra.mxu0 0.0
    %475 = vmatprep.subr.mxu0 0.0
    %476 = vmatpush1.msra.mxu0 0.0
    %477 = vmatprep.subr.mxu0 0.0
    %478 = vmatpush1.msra.mxu0 0.0
    %479 = vmatprep.subr.mxu0 0.0
    %480 = vmatpush1.msra.mxu0 0.0
    %481 = vmatprep.subr.mxu0 0.0
    %482 = vmatpush1.msra.mxu0 0.0
    %483 = vmatprep.subr.mxu0 0.0
    %484 = vmatpush1.msra.mxu0 0.0
    %485 = vmatprep.subr.mxu0 0.0
    %486 = vmatpush1.msra.mxu0 0.0
    %487 = vmatprep.subr.mxu0 0.0
    %488 = vmatpush1.msra.mxu0 0.0
    %489 = vmatprep.subr.mxu0 0.0
    %490 = vmatpush1.msra.mxu0 0.0
    %491 = vmatprep.subr.mxu0 0.0
    %492 = vmatpush1.msra.mxu0 0.0
    %493 = vmatprep.subr.mxu0 0.0
    %494 = vmatpush1.msra.mxu0 0.0
    %495 = vmatprep.subr.mxu0 0.0
    %496 = vmatpush1.msra.mxu0 0.0
    %497 = vmatprep.subr.mxu0 0.0
    %498 = vmatpush1.msra.mxu0 0.0
    %499 = vmatprep.subr.mxu0 0.0
    %500 = vmatpush1.msra.mxu0 0.0
    %501 = vmatprep.subr.mxu0 0.0
    %502 = vmatpush1.msra.mxu0 0.0
    %503 = vmatprep.subr.mxu0 0.0
    %504 = vmatpush1.msra.mxu0 0.0
    %505 = vmatprep.subr.mxu0 0.0
    %506 = vmatpush1.msra.mxu0 0.0
    %507 = vmatprep.subr.mxu0 0.0
    %508 = vmatpush1.msra.mxu0 0.0
    %509 = vmatprep.subr.mxu0 0.0
    %510 = vmatpush1.msra.mxu0 0.0
    %511 = vmatprep.subr.mxu0 0.0
    %512 = vmatpush1.msra.mxu0 0.0
    %513 = vmatprep.subr.mxu0 0.0
    %514 = vmatpush1.msra.mxu0 0.0
    %515 = vmatprep.subr.mxu0 0.0
    %516 = vmatpush1.msra.mxu0 0.0
    %517 = vmatprep.subr.mxu0 0.0
    %518 = vmatpush1.msra.mxu0 0.0
    %519 = vmatprep.subr.mxu0 0.0
    %520 = vmatpush1.msra.mxu0 0.0
    %521 = vmatprep.subr.mxu0 0.0
    %522 = vmatpush1.msra.mxu0 0.0
    %523 = vmatprep.mubr.f32.mxu0 0.0
    %524 = vmatmul.mubr.f32.gmra.mrb[0].mxu0 %v457
    %v525 = vpop.f32.mrb[0].mxu0
    %v526 = vadd.f32 0.0, %v525
    %v527 = vpop.f32.mrb[0].mxu0
    %528 = vdwg.mxu0
    %v530 = vrot.slane %v526, 4
    %v532 = vadd.f32 %v135, %v530
    %v533 = vtanh.pop %v532
    %v534 = vmul.f32 %v533, 0.5
    %v535 = vadd.f32 %v534, 0.5
    %v537 = vrot.slane %v447, 4
    %v539 = vmul.f32 %v535, %v537
    %541 = vrot.lane.b32.xlu0 %v533, 64
    %v542 = vpop.permute.xlu0 %541
    %v544 = vmul.f32 %v535, %v542
    %546 = vrot.lane.b32.xlu0 %v544, 32
    %v547 = vpop.permute.xlu0 %546
    %v549 = vadd.f32 %v539, %v547
    %v550 = vtanh.pop %v549
    %552 = vrot.lane.b32.xlu0 %v550, 64
    %v553 = vpop.permute.xlu0 %552
    %v555 = vmul.f32 %v535, %v553
    %v557 = vrot.slane %v555, 4
    %558 = vrot.lane.b32.xlu0 %v557, 32
    %v559 = vpop.permute.xlu0 %558
    %v560 = vsel %vm157, %v559, 0
    %562 = vmatprep.subr.mxu0 0.0
    %563 = vmatpush1.msra.mxu0 %v153
    %564 = vmatprep.subr.mxu0 0.0
    %565 = vmatpush1.msra.mxu0 %v154
    %566 = vmatprep.subr.mxu0 0.0
    %567 = vmatpush1.msra.mxu0 %v155
    %568 = vmatprep.subr.mxu0 0.0
    %569 = vmatpush1.msra.mxu0 %v156
    %570 = vmatprep.subr.mxu0 0.0
    %571 = vmatpush1.msra.mxu0 0.0
    %572 = vmatprep.subr.mxu0 0.0
    %573 = vmatpush1.msra.mxu0 0.0
    %574 = vmatprep.subr.mxu0 0.0
    %575 = vmatpush1.msra.mxu0 0.0
    %576 = vmatprep.subr.mxu0 0.0
    %577 = vmatpush1.msra.mxu0 0.0
    %578 = vmatprep.subr.mxu0 0.0
    %579 = vmatpush1.msra.mxu0 0.0
    %580 = vmatprep.subr.mxu0 0.0
    %581 = vmatpush1.msra.mxu0 0.0
    %582 = vmatprep.subr.mxu0 0.0
    %583 = vmatpush1.msra.mxu0 0.0
    %584 = vmatprep.subr.mxu0 0.0
    %585 = vmatpush1.msra.mxu0 0.0
    %586 = vmatprep.subr.mxu0 0.0
    %587 = vmatpush1.msra.mxu0 0.0
    %588 = vmatprep.subr.mxu0 0.0
    %589 = vmatpush1.msra.mxu0 0.0
    %590 = vmatprep.subr.mxu0 0.0
    %591 = vmatpush1.msra.mxu0 0.0
    %592 = vmatprep.subr.mxu0 0.0
    %593 = vmatpush1.msra.mxu0 0.0
    %594 = vmatprep.subr.mxu0 0.0
    %595 = vmatpush1.msra.mxu0 0.0
    %596 = vmatprep.subr.mxu0 0.0
    %597 = vmatpush1.msra.mxu0 0.0
    %598 = vmatprep.subr.mxu0 0.0
    %599 = vmatpush1.msra.mxu0 0.0
    %600 = vmatprep.subr.mxu0 0.0
    %601 = vmatpush1.msra.mxu0 0.0
    %602 = vmatprep.subr.mxu0 0.0
    %603 = vmatpush1.msra.mxu0 0.0
    %604 = vmatprep.subr.mxu0 0.0
    %605 = vmatpush1.msra.mxu0 0.0
    %606 = vmatprep.subr.mxu0 0.0
    %607 = vmatpush1.msra.mxu0 0.0
    %608 = vmatprep.subr.mxu0 0.0
    %609 = vmatpush1.msra.mxu0 0.0
    %610 = vmatprep.subr.mxu0 0.0
    %611 = vmatpush1.msra.mxu0 0.0
    %612 = vmatprep.subr.mxu0 0.0
    %613 = vmatpush1.msra.mxu0 0.0
    %614 = vmatprep.subr.mxu0 0.0
    %615 = vmatpush1.msra.mxu0 0.0
    %616 = vmatprep.subr.mxu0 0.0
    %617 = vmatpush1.msra.mxu0 0.0
    %618 = vmatprep.subr.mxu0 0.0
    %619 = vmatpush1.msra.mxu0 0.0
    %620 = vmatprep.subr.mxu0 0.0
    %621 = vmatpush1.msra.mxu0 0.0
    %622 = vmatprep.subr.mxu0 0.0
    %623 = vmatpush1.msra.mxu0 0.0
    %624 = vmatprep.subr.mxu0 0.0
    %625 = vmatpush1.msra.mxu0 0.0
    %626 = vmatprep.mubr.f32.mxu0 0.0
    %627 = vmatmul.mubr.f32.gmra.mrb[0].mxu0 %v560
    %v628 = vpop.f32.mrb[0].mxu0
    %v629 = vadd.f32 0.0, %v628
    %v630 = vpop.f32.mrb[0].mxu0
    %631 = vdwg.mxu0
    %v632 = vadd.f32 %v140, %v629
    %v633 = vtanh.pop %v632
    %v634 = vmul.f32 %v633, 0.5
    %v635 = vadd.f32 %v634, 0.5
    %v637 = vrot.slane %v549, 4
    %v639 = vmul.f32 %v635, %v637
    %641 = vrot.lane.b32.xlu0 %v633, 64
    %v642 = vpop.permute.xlu0 %641
    %v644 = vmul.f32 %v635, %v642
    %646 = vrot.lane.b32.xlu0 %v644, 32
    %v647 = vpop.permute.xlu0 %646
    %v649 = vadd.f32 %v639, %v647
    %v650 = vtanh.pop %v649
    %652 = vrot.lane.b32.xlu0 %v650, 64
    %v653 = vpop.permute.xlu0 %652
    %v655 = vmul.f32 %v635, %v653
    %657 = vrot.lane.b32.xlu0 %v655, 32
    %v658 = vpop.permute.xlu0 %657
    %v659 = vsel %vm157, %v658, 0
    %661 = vmatprep.subr.mxu0 0.0
    %662 = vmatpush1.msra.mxu0 %v153
    %663 = vmatprep.subr.mxu0 0.0
    %664 = vmatpush1.msra.mxu0 %v154
    %665 = vmatprep.subr.mxu0 0.0
    %666 = vmatpush1.msra.mxu0 %v155
    %667 = vmatprep.subr.mxu0 0.0
    %668 = vmatpush1.msra.mxu0 %v156
    %669 = vmatprep.subr.mxu0 0.0
    %670 = vmatpush1.msra.mxu0 0.0
    %671 = vmatprep.subr.mxu0 0.0
    %672 = vmatpush1.msra.mxu0 0.0
    %673 = vmatprep.subr.mxu0 0.0
    %674 = vmatpush1.msra.mxu0 0.0
    %675 = vmatprep.subr.mxu0 0.0
    %676 = vmatpush1.msra.mxu0 0.0
    %677 = vmatprep.subr.mxu0 0.0
    %678 = vmatpush1.msra.mxu0 0.0
    %679 = vmatprep.subr.mxu0 0.0
    %680 = vmatpush1.msra.mxu0 0.0
    %681 = vmatprep.subr.mxu0 0.0
    %682 = vmatpush1.msra.mxu0 0.0
    %683 = vmatprep.subr.mxu0 0.0
    %684 = vmatpush1.msra.mxu0 0.0
    %685 = vmatprep.subr.mxu0 0.0
    %686 = vmatpush1.msra.mxu0 0.0
    %687 = vmatprep.subr.mxu0 0.0
    %688 = vmatpush1.msra.mxu0 0.0
    %689 = vmatprep.subr.mxu0 0.0
    %690 = vmatpush1.msra.mxu0 0.0
    %691 = vmatprep.subr.mxu0 0.0
    %692 = vmatpush1.msra.mxu0 0.0
    %693 = vmatprep.subr.mxu0 0.0
    %694 = vmatpush1.msra.mxu0 0.0
    %695 = vmatprep.subr.mxu0 0.0
    %696 = vmatpush1.msra.mxu0 0.0
    %697 = vmatprep.subr.mxu0 0.0
    %698 = vmatpush1.msra.mxu0 0.0
    %699 = vmatprep.subr.mxu0 0.0
    %700 = vmatpush1.msra.mxu0 0.0
    %701 = vmatprep.subr.mxu0 0.0
    %702 = vmatpush1.msra.mxu0 0.0
    %703 = vmatprep.subr.mxu0 0.0
    %704 = vmatpush1.msra.mxu0 0.0
    %705 = vmatprep.subr.mxu0 0.0
    %706 = vmatpush1.msra.mxu0 0.0
    %707 = vmatprep.subr.mxu0 0.0
    %708 = vmatpush1.msra.mxu0 0.0
    %709 = vmatprep.subr.mxu0 0.0
    %710 = vmatpush1.msra.mxu0 0.0
    %711 = vmatprep.subr.mxu0 0.0
    %712 = vmatpush1.msra.mxu0 0.0
    %713 = vmatprep.subr.mxu0 0.0
    %714 = vmatpush1.msra.mxu0 0.0
    %715 = vmatprep.subr.mxu0 0.0
    %716 = vmatpush1.msra.mxu0 0.0
    %717 = vmatprep.subr.mxu0 0.0
    %718 = vmatpush1.msra.mxu0 0.0
    %719 = vmatprep.subr.mxu0 0.0
    %720 = vmatpush1.msra.mxu0 0.0
    %721 = vmatprep.subr.mxu0 0.0
    %722 = vmatpush1.msra.mxu0 0.0
    %723 = vmatprep.subr.mxu0 0.0
    %724 = vmatpush1.msra.mxu0 0.0
    %725 = vmatprep.mubr.f32.mxu0 0.0
    %726 = vmatmul.mubr.f32.gmra.mrb[0].mxu0 %v659
    %v727 = vpop.f32.mrb[0].mxu0
    %v728 = vadd.f32 0.0, %v727
    %v729 = vpop.f32.mrb[0].mxu0
    %730 = vdwg.mxu0
    %v732 = vrot.slane %v728, 4
    %v734 = vadd.f32 %v140, %v732
    %v735 = vtanh.pop %v734
    %v736 = vmul.f32 %v735, 0.5
    %v737 = vadd.f32 %v736, 0.5
    %v739 = vrot.slane %v649, 4
    %v741 = vmul.f32 %v737, %v739
    %743 = vrot.lane.b32.xlu0 %v735, 64
    %v744 = vpop.permute.xlu0 %743
    %v746 = vmul.f32 %v737, %v744
    %748 = vrot.lane.b32.xlu0 %v746, 32
    %v749 = vpop.permute.xlu0 %748
    %v751 = vadd.f32 %v741, %v749
    %v752 = vtanh.pop %v751
    %754 = vrot.lane.b32.xlu0 %v752, 64
    %v755 = vpop.permute.xlu0 %754
    %v757 = vmul.f32 %v737, %v755
    %v759 = vrot.slane %v757, 4
    %760 = vrot.lane.b32.xlu0 %v759, 32
    %v761 = vpop.permute.xlu0 %760
    %v762 = vsel %vm157, %v761, 0
    %764 = vmatprep.subr.mxu0 0.0
    %765 = vmatpush1.msra.mxu0 %v153
    %766 = vmatprep.subr.mxu0 0.0
    %767 = vmatpush1.msra.mxu0 %v154
    %768 = vmatprep.subr.mxu0 0.0
    %769 = vmatpush1.msra.mxu0 %v155
    %770 = vmatprep.subr.mxu0 0.0
    %771 = vmatpush1.msra.mxu0 %v156
    %772 = vmatprep.subr.mxu0 0.0
    %773 = vmatpush1.msra.mxu0 0.0
    %774 = vmatprep.subr.mxu0 0.0
    %775 = vmatpush1.msra.mxu0 0.0
    %776 = vmatprep.subr.mxu0 0.0
    %777 = vmatpush1.msra.mxu0 0.0
    %778 = vmatprep.subr.mxu0 0.0
    %779 = vmatpush1.msra.mxu0 0.0
    %780 = vmatprep.subr.mxu0 0.0
    %781 = vmatpush1.msra.mxu0 0.0
    %782 = vmatprep.subr.mxu0 0.0
    %783 = vmatpush1.msra.mxu0 0.0
    %784 = vmatprep.subr.mxu0 0.0
    %785 = vmatpush1.msra.mxu0 0.0
    %786 = vmatprep.subr.mxu0 0.0
    %787 = vmatpush1.msra.mxu0 0.0
    %788 = vmatprep.subr.mxu0 0.0
    %789 = vmatpush1.msra.mxu0 0.0
    %790 = vmatprep.subr.mxu0 0.0
    %791 = vmatpush1.msra.mxu0 0.0
    %792 = vmatprep.subr.mxu0 0.0
    %793 = vmatpush1.msra.mxu0 0.0
    %794 = vmatprep.subr.mxu0 0.0
    %795 = vmatpush1.msra.mxu0 0.0
    %796 = vmatprep.subr.mxu0 0.0
    %797 = vmatpush1.msra.mxu0 0.0
    %798 = vmatprep.subr.mxu0 0.0
    %799 = vmatpush1.msra.mxu0 0.0
    %800 = vmatprep.subr.mxu0 0.0
    %801 = vmatpush1.msra.mxu0 0.0
    %802 = vmatprep.subr.mxu0 0.0
    %803 = vmatpush1.msra.mxu0 0.0
    %804 = vmatprep.subr.mxu0 0.0
    %805 = vmatpush1.msra.mxu0 0.0
    %806 = vmatprep.subr.mxu0 0.0
    %807 = vmatpush1.msra.mxu0 0.0
    %808 = vmatprep.subr.mxu0 0.0
    %809 = vmatpush1.msra.mxu0 0.0
    %810 = vmatprep.subr.mxu0 0.0
    %811 = vmatpush1.msra.mxu0 0.0
    %812 = vmatprep.subr.mxu0 0.0
    %813 = vmatpush1.msra.mxu0 0.0
    %814 = vmatprep.subr.mxu0 0.0
    %815 = vmatpush1.msra.mxu0 0.0
    %816 = vmatprep.subr.mxu0 0.0
    %817 = vmatpush1.msra.mxu0 0.0
    %818 = vmatprep.subr.mxu0 0.0
    %819 = vmatpush1.msra.mxu0 0.0
    %820 = vmatprep.subr.mxu0 0.0
    %821 = vmatpush1.msra.mxu0 0.0
    %822 = vmatprep.subr.mxu0 0.0
    %823 = vmatpush1.msra.mxu0 0.0
    %824 = vmatprep.subr.mxu0 0.0
    %825 = vmatpush1.msra.mxu0 0.0
    %826 = vmatprep.subr.mxu0 0.0
    %827 = vmatpush1.msra.mxu0 0.0
    %828 = vmatprep.mubr.f32.mxu0 0.0
    %829 = vmatmul.mubr.f32.gmra.mrb[0].mxu0 %v762
    %v830 = vpop.f32.mrb[0].mxu0
    %v831 = vadd.f32 0.0, %v830
    %v832 = vpop.f32.mrb[0].mxu0
    %833 = vdwg.mxu0
    %v834 = vadd.f32 %v145, %v831
    %v835 = vtanh.pop %v834
    %v836 = vmul.f32 %v835, 0.5
    %v837 = vadd.f32 %v836, 0.5
    %v839 = vrot.slane %v751, 4
    %v841 = vmul.f32 %v837, %v839
    %843 = vrot.lane.b32.xlu0 %v835, 64
    %v844 = vpop.permute.xlu0 %843
    %v846 = vmul.f32 %v837, %v844
    %848 = vrot.lane.b32.xlu0 %v846, 32
    %v849 = vpop.permute.xlu0 %848
    %v851 = vadd.f32 %v841, %v849
    %v852 = vtanh.pop %v851
    %854 = vrot.lane.b32.xlu0 %v852, 64
    %v855 = vpop.permute.xlu0 %854
    %v857 = vmul.f32 %v837, %v855
    %859 = vrot.lane.b32.xlu0 %v857, 32
    %v860 = vpop.permute.xlu0 %859
    %v861 = vsel %vm157, %v860, 0
    %863 = vmatprep.subr.mxu0 0.0
    %864 = vmatpush1.msra.mxu0 %v153
    %865 = vmatprep.subr.mxu0 0.0
    %866 = vmatpush1.msra.mxu0 %v154
    %867 = vmatprep.subr.mxu0 0.0
    %868 = vmatpush1.msra.mxu0 %v155
    %869 = vmatprep.subr.mxu0 0.0
    %870 = vmatpush1.msra.mxu0 %v156
    %871 = vmatprep.subr.mxu0 0.0
    %872 = vmatpush1.msra.mxu0 0.0
    %873 = vmatprep.subr.mxu0 0.0
    %874 = vmatpush1.msra.mxu0 0.0
    %875 = vmatprep.subr.mxu0 0.0
    %876 = vmatpush1.msra.mxu0 0.0
    %877 = vmatprep.subr.mxu0 0.0
    %878 = vmatpush1.msra.mxu0 0.0
    %879 = vmatprep.subr.mxu0 0.0
    %880 = vmatpush1.msra.mxu0 0.0
    %881 = vmatprep.subr.mxu0 0.0
    %882 = vmatpush1.msra.mxu0 0.0
    %883 = vmatprep.subr.mxu0 0.0
    %884 = vmatpush1.msra.mxu0 0.0
    %885 = vmatprep.subr.mxu0 0.0
    %886 = vmatpush1.msra.mxu0 0.0
    %887 = vmatprep.subr.mxu0 0.0
    %888 = vmatpush1.msra.mxu0 0.0
    %889 = vmatprep.subr.mxu0 0.0
    %890 = vmatpush1.msra.mxu0 0.0
    %891 = vmatprep.subr.mxu0 0.0
    %892 = vmatpush1.msra.mxu0 0.0
    %893 = vmatprep.subr.mxu0 0.0
    %894 = vmatpush1.msra.mxu0 0.0
    %895 = vmatprep.subr.mxu0 0.0
    %896 = vmatpush1.msra.mxu0 0.0
    %897 = vmatprep.subr.mxu0 0.0
    %898 = vmatpush1.msra.mxu0 0.0
    %899 = vmatprep.subr.mxu0 0.0
    %900 = vmatpush1.msra.mxu0 0.0
    %901 = vmatprep.subr.mxu0 0.0
    %902 = vmatpush1.msra.mxu0 0.0
    %903 = vmatprep.subr.mxu0 0.0
    %904 = vmatpush1.msra.mxu0 0.0
    %905 = vmatprep.subr.mxu0 0.0
    %906 = vmatpush1.msra.mxu0 0.0
    %907 = vmatprep.subr.mxu0 0.0
    %908 = vmatpush1.msra.mxu0 0.0
    %909 = vmatprep.subr.mxu0 0.0
    %910 = vmatpush1.msra.mxu0 0.0
    %911 = vmatprep.subr.mxu0 0.0
    %912 = vmatpush1.msra.mxu0 0.0
    %913 = vmatprep.subr.mxu0 0.0
    %914 = vmatpush1.msra.mxu0 0.0
    %915 = vmatprep.subr.mxu0 0.0
    %916 = vmatpush1.msra.mxu0 0.0
    %917 = vmatprep.subr.mxu0 0.0
    %918 = vmatpush1.msra.mxu0 0.0
    %919 = vmatprep.subr.mxu0 0.0
    %920 = vmatpush1.msra.mxu0 0.0
    %921 = vmatprep.subr.mxu0 0.0
    %922 = vmatpush1.msra.mxu0 0.0
    %923 = vmatprep.subr.mxu0 0.0
    %924 = vmatpush1.msra.mxu0 0.0
    %925 = vmatprep.subr.mxu0 0.0
    %926 = vmatpush1.msra.mxu0 0.0
    %927 = vmatprep.mubr.f32.mxu0 0.0
    %928 = vmatmul.mubr.f32.gmra.mrb[0].mxu0 %v861
    %v929 = vpop.f32.mrb[0].mxu0
    %v930 = vadd.f32 0.0, %v929
    %v931 = vpop.f32.mrb[0].mxu0
    %932 = vdwg.mxu0
    %v934 = vrot.slane %v930, 4
    %v936 = vadd.f32 %v145, %v934
    %v937 = vtanh.pop %v936
    %v938 = vmul.f32 %v937, 0.5
    %v939 = vadd.f32 %v938, 0.5
    %v941 = vrot.slane %v851, 4
    %v943 = vmul.f32 %v939, %v941
    %945 = vrot.lane.b32.xlu0 %v937, 64
    %v946 = vpop.permute.xlu0 %945
    %v948 = vmul.f32 %v939, %v946
    %950 = vrot.lane.b32.xlu0 %v948, 32
    %v951 = vpop.permute.xlu0 %950
    %v953 = vadd.f32 %v943, %v951
    %v954 = vtanh.pop %v953
    %956 = vrot.lane.b32.xlu0 %v954, 64
    %v957 = vpop.permute.xlu0 %956
    %v959 = vmul.f32 %v939, %v957
    %v961 = vrot.slane %v959, 4
    %962 = vrot.lane.b32.xlu0 %v961, 32
    %v963 = vpop.permute.xlu0 %962
    %v964 = vsel %vm157, %v963, 0
    %966 = vmatprep.subr.mxu0 0.0
    %967 = vmatpush1.msra.mxu0 %v153
    %968 = vmatprep.subr.mxu0 0.0
    %969 = vmatpush1.msra.mxu0 %v154
    %970 = vmatprep.subr.mxu0 0.0
    %971 = vmatpush1.msra.mxu0 %v155
    %972 = vmatprep.subr.mxu0 0.0
    %973 = vmatpush1.msra.mxu0 %v156
    %974 = vmatprep.subr.mxu0 0.0
    %975 = vmatpush1.msra.mxu0 0.0
    %976 = vmatprep.subr.mxu0 0.0
    %977 = vmatpush1.msra.mxu0 0.0
    %978 = vmatprep.subr.mxu0 0.0
    %979 = vmatpush1.msra.mxu0 0.0
    %980 = vmatprep.subr.mxu0 0.0
    %981 = vmatpush1.msra.mxu0 0.0
    %982 = vmatprep.subr.mxu0 0.0
    %983 = vmatpush1.msra.mxu0 0.0
    %984 = vmatprep.subr.mxu0 0.0
    %985 = vmatpush1.msra.mxu0 0.0
    %986 = vmatprep.subr.mxu0 0.0
    %987 = vmatpush1.msra.mxu0 0.0
    %988 = vmatprep.subr.mxu0 0.0
    %989 = vmatpush1.msra.mxu0 0.0
    %990 = vmatprep.subr.mxu0 0.0
    %991 = vmatpush1.msra.mxu0 0.0
    %992 = vmatprep.subr.mxu0 0.0
    %993 = vmatpush1.msra.mxu0 0.0
    %994 = vmatprep.subr.mxu0 0.0
    %995 = vmatpush1.msra.mxu0 0.0
    %996 = vmatprep.subr.mxu0 0.0
    %997 = vmatpush1.msra.mxu0 0.0
    %998 = vmatprep.subr.mxu0 0.0
    %999 = vmatpush1.msra.mxu0 0.0
    %1000 = vmatprep.subr.mxu0 0.0
    %1001 = vmatpush1.msra.mxu0 0.0
    %1002 = vmatprep.subr.mxu0 0.0
    %1003 = vmatpush1.msra.mxu0 0.0
    %1004 = vmatprep.subr.mxu0 0.0
    %1005 = vmatpush1.msra.mxu0 0.0
    %1006 = vmatprep.subr.mxu0 0.0
    %1007 = vmatpush1.msra.mxu0 0.0
    %1008 = vmatprep.subr.mxu0 0.0
    %1009 = vmatpush1.msra.mxu0 0.0
    %1010 = vmatprep.subr.mxu0 0.0
    %1011 = vmatpush1.msra.mxu0 0.0
    %1012 = vmatprep.subr.mxu0 0.0
    %1013 = vmatpush1.msra.mxu0 0.0
    %1014 = vmatprep.subr.mxu0 0.0
    %1015 = vmatpush1.msra.mxu0 0.0
    %1016 = vmatprep.subr.mxu0 0.0
    %1017 = vmatpush1.msra.mxu0 0.0
    %1018 = vmatprep.subr.mxu0 0.0
    %1019 = vmatpush1.msra.mxu0 0.0
    %1020 = vmatprep.subr.mxu0 0.0
    %1021 = vmatpush1.msra.mxu0 0.0
    %1022 = vmatprep.subr.mxu0 0.0
    %1023 = vmatpush1.msra.mxu0 0.0
    %1024 = vmatprep.subr.mxu0 0.0
    %1025 = vmatpush1.msra.mxu0 0.0
    %1026 = vmatprep.subr.mxu0 0.0
    %1027 = vmatpush1.msra.mxu0 0.0
    %1028 = vmatprep.subr.mxu0 0.0
    %1029 = vmatpush1.msra.mxu0 0.0
    %1030 = vmatprep.mubr.f32.mxu0 0.0
    %1031 = vmatmul.mubr.f32.gmra.mrb[0].mxu0 %v964
    %v1032 = vpop.f32.mrb[0].mxu0
    %v1033 = vadd.f32 0.0, %v1032
    %v1034 = vpop.f32.mrb[0].mxu0
    %1035 = vdwg.mxu0
    %v1036 = vadd.f32 %v150, %v1033
    %v1037 = vtanh.pop %v1036
    %v1038 = vmul.f32 %v1037, 0.5
    %v1039 = vadd.f32 %v1038, 0.5
    %v1041 = vrot.slane %v953, 4
    %v1043 = vmul.f32 %v1039, %v1041
    %1045 = vrot.lane.b32.xlu0 %v1037, 64
    %v1046 = vpop.permute.xlu0 %1045
    %v1048 = vmul.f32 %v1039, %v1046
    %1050 = vrot.lane.b32.xlu0 %v1048, 32
    %v1051 = vpop.permute.xlu0 %1050
    %v1053 = vadd.f32 %v1043, %v1051
    %v1054 = vtanh.pop %v1053
    %1056 = vrot.lane.b32.xlu0 %v1054, 64
    %v1057 = vpop.permute.xlu0 %1056
    %v1059 = vmul.f32 %v1039, %v1057
    %v1060 = vld [vmem:[%s5] sm:$0xff]
    %v1061 = vld [vmem:[%s5 + $0x8] sm:$0xff]
    %v1062 = vld [vmem:[%s5 + $0x10] sm:$0xff]
    %v1063 = vld [vmem:[%s5 + $0x18] sm:$0xff]
    %v1064 = vld [vmem:[%s1] sm:$0xf]
    %v1065 = vld [vmem:[%s6] sm:$0xff]
    %v1066 = vld [vmem:[%s6 + $0x8] sm:$0xff]
    %v1067 = vld [vmem:[%s6 + $0x10] sm:$0xff]
    %v1068 = vld [vmem:[%s6 + $0x18] sm:$0xff]
    %v1070 = vsel %vm157, %v1064, 0
    %1072 = vmatprep.subr.mxu0 0.0
    %1073 = vmatpush1.msra.mxu0 %v1065
    %1074 = vmatprep.subr.mxu0 0.0
    %1075 = vmatpush1.msra.mxu0 %v1066
    %1076 = vmatprep.subr.mxu0 0.0
    %1077 = vmatpush1.msra.mxu0 %v1067
    %1078 = vmatprep.subr.mxu0 0.0
    %1079 = vmatpush1.msra.mxu0 %v1068
    %1080 = vmatprep.subr.mxu0 0.0
    %1081 = vmatpush1.msra.mxu0 0.0
    %1082 = vmatprep.subr.mxu0 0.0
    %1083 = vmatpush1.msra.mxu0 0.0
    %1084 = vmatprep.subr.mxu0 0.0
    %1085 = vmatpush1.msra.mxu0 0.0
    %1086 = vmatprep.subr.mxu0 0.0
    %1087 = vmatpush1.msra.mxu0 0.0
    %1088 = vmatprep.subr.mxu0 0.0
    %1089 = vmatpush1.msra.mxu0 0.0
    %1090 = vmatprep.subr.mxu0 0.0
    %1091 = vmatpush1.msra.mxu0 0.0
    %1092 = vmatprep.subr.mxu0 0.0
    %1093 = vmatpush1.msra.mxu0 0.0
    %1094 = vmatprep.subr.mxu0 0.0
    %1095 = vmatpush1.msra.mxu0 0.0
    %1096 = vmatprep.subr.mxu0 0.0
    %1097 = vmatpush1.msra.mxu0 0.0
    %1098 = vmatprep.subr.mxu0 0.0
    %1099 = vmatpush1.msra.mxu0 0.0
    %1100 = vmatprep.subr.mxu0 0.0
    %1101 = vmatpush1.msra.mxu0 0.0
    %1102 = vmatprep.subr.mxu0 0.0
    %1103 = vmatpush1.msra.mxu0 0.0
    %1104 = vmatprep.subr.mxu0 0.0
    %1105 = vmatpush1.msra.mxu0 0.0
    %1106 = vmatprep.subr.mxu0 0.0
    %1107 = vmatpush1.msra.mxu0 0.0
    %1108 = vmatprep.subr.mxu0 0.0
    %1109 = vmatpush1.msra.mxu0 0.0
    %1110 = vmatprep.subr.mxu0 0.0
    %1111 = vmatpush1.msra.mxu0 0.0
    %1112 = vmatprep.subr.mxu0 0.0
    %1113 = vmatpush1.msra.mxu0 0.0
    %1114 = vmatprep.subr.mxu0 0.0
    %1115 = vmatpush1.msra.mxu0 0.0
    %1116 = vmatprep.subr.mxu0 0.0
    %1117 = vmatpush1.msra.mxu0 0.0
    %1118 = vmatprep.subr.mxu0 0.0
    %1119 = vmatpush1.msra.mxu0 0.0
    %1120 = vmatprep.subr.mxu0 0.0
    %1121 = vmatpush1.msra.mxu0 0.0
    %1122 = vmatprep.subr.mxu0 0.0
    %1123 = vmatpush1.msra.mxu0 0.0
    %1124 = vmatprep.subr.mxu0 0.0
    %1125 = vmatpush1.msra.mxu0 0.0
    %1126 = vmatprep.subr.mxu0 0.0
    %1127 = vmatpush1.msra.mxu0 0.0
    %1128 = vmatprep.subr.mxu0 0.0
    %1129 = vmatpush1.msra.mxu0 0.0
    %1130 = vmatprep.subr.mxu0 0.0
    %1131 = vmatpush1.msra.mxu0 0.0
    %1132 = vmatprep.subr.mxu0 0.0
    %1133 = vmatpush1.msra.mxu0 0.0
    %1134 = vmatprep.subr.mxu0 0.0
    %1135 = vmatpush1.msra.mxu0 0.0
    %1136 = vmatprep.mubr.f32.mxu0 0.0
    %1137 = vmatmul.mubr.f32.gmra.mrb[0].mxu0 %v1070
    %v1138 = vpop.f32.mrb[0].mxu0
    %v1139 = vadd.f32 0.0, %v1138
    %v1140 = vpop.f32.mrb[0].mxu0
    %1141 = vdwg.mxu0
    %1143 = vrot.lane.b32.xlu0 %v1059, 32
    %v1144 = vpop.permute.xlu0 %1143
    %v1145 = vsel %vm157, %v1144, 0
    %1147 = vmatprep.subr.mxu0 0.0
    %1148 = vmatpush1.msra.mxu0 %v1060
    %1149 = vmatprep.subr.mxu0 0.0
    %1150 = vmatpush1.msra.mxu0 %v1061
    %1151 = vmatprep.subr.mxu0 0.0
    %1152 = vmatpush1.msra.mxu0 %v1062
    %1153 = vmatprep.subr.mxu0 0.0
    %1154 = vmatpush1.msra.mxu0 %v1063
    %1155 = vmatprep.subr.mxu0 0.0
    %1156 = vmatpush1.msra.mxu0 0.0
    %1157 = vmatprep.subr.mxu0 0.0
    %1158 = vmatpush1.msra.mxu0 0.0
    %1159 = vmatprep.subr.mxu0 0.0
    %1160 = vmatpush1.msra.mxu0 0.0
    %1161 = vmatprep.subr.mxu0 0.0
    %1162 = vmatpush1.msra.mxu0 0.0
    %1163 = vmatprep.subr.mxu0 0.0
    %1164 = vmatpush1.msra.mxu0 0.0
    %1165 = vmatprep.subr.mxu0 0.0
    %1166 = vmatpush1.msra.mxu0 0.0
    %1167 = vmatprep.subr.mxu0 0.0
    %1168 = vmatpush1.msra.mxu0 0.0
    %1169 = vmatprep.subr.mxu0 0.0
    %1170 = vmatpush1.msra.mxu0 0.0
    %1171 = vmatprep.subr.mxu0 0.0
    %1172 = vmatpush1.msra.mxu0 0.0
    %1173 = vmatprep.subr.mxu0 0.0
    %1174 = vmatpush1.msra.mxu0 0.0
    %1175 = vmatprep.subr.mxu0 0.0
    %1176 = vmatpush1.msra.mxu0 0.0
    %1177 = vmatprep.subr.mxu0 0.0
    %1178 = vmatpush1.msra.mxu0 0.0
    %1179 = vmatprep.subr.mxu0 0.0
    %1180 = vmatpush1.msra.mxu0 0.0
    %1181 = vmatprep.subr.mxu0 0.0
    %1182 = vmatpush1.msra.mxu0 0.0
    %1183 = vmatprep.subr.mxu0 0.0
    %1184 = vmatpush1.msra.mxu0 0.0
    %1185 = vmatprep.subr.mxu0 0.0
    %1186 = vmatpush1.msra.mxu0 0.0
    %1187 = vmatprep.subr.mxu0 0.0
    %1188 = vmatpush1.msra.mxu0 0.0
    %1189 = vmatprep.subr.mxu0 0.0
    %1190 = vmatpush1.msra.mxu0 0.0
    %1191 = vmatprep.subr.mxu0 0.0
    %1192 = vmatpush1.msra.mxu0 0.0
    %1193 = vmatprep.subr.mxu0 0.0
    %1194 = vmatpush1.msra.mxu0 0.0
    %1195 = vmatprep.subr.mxu0 0.0
    %1196 = vmatpush1.msra.mxu0 0.0
    %1197 = vmatprep.subr.mxu0 0.0
    %1198 = vmatpush1.msra.mxu0 0.0
    %1199 = vmatprep.subr.mxu0 0.0
    %1200 = vmatpush1.msra.mxu0 0.0
    %1201 = vmatprep.subr.mxu0 0.0
    %1202 = vmatpush1.msra.mxu0 0.0
    %1203 = vmatprep.subr.mxu0 0.0
    %1204 = vmatpush1.msra.mxu0 0.0
    %1205 = vmatprep.subr.mxu0 0.0
    %1206 = vmatpush1.msra.mxu0 0.0
    %1207 = vmatprep.subr.mxu0 0.0
    %1208 = vmatpush1.msra.mxu0 0.0
    %1209 = vmatprep.subr.mxu0 0.0
    %1210 = vmatpush1.msra.mxu0 0.0
    %1211 = vmatprep.mubr.f32.mxu0 0.0
    %1212 = vmatmul.mubr.f32.gmra.mrb[0].mxu0 %v1145
    %v1213 = vpop.f32.mrb[0].mxu0
    %v1214 = vadd.f32 %v1139, %v1213
    %v1215 = vpop.f32.mrb[0].mxu0
    %1216 = vdwg.mxu0
    %v1217 = vld [vmem:[%s7] sm:$0x1]
    %v1219 = vlaneseq
    %v1220 = vshrl.u32 %v1219, 7
    %v1221 = vsub.s32 0, %v1220
    %v1222 = vrot.slane %v1217, %v1221
    %v1224 = vadd.f32 %v1214, %v1222
    %vm1225 = vcmask 60416
    %1226 = vst.msk [vmem:[#allocation2] sm:$0xf] %vm1225, %v1224
    // Predicated region
    $region34: #{tpu_custom_call.1} parent=1 // pred_check
      _
    $region35: #{tpu_custom_call.1} parent=1 // pred_check_branch
      %1228 = sbr.rel (0) target = $region37
    $region36: #{tpu_custom_call.1} parent=1 // pred_region
      %s1230 = ssub.s32 64, 64
      %1231 = vsyncadd [#allocation3], %s1230
      %s1233 = sshll.u32 [#allocation2], 4
      %s1234 = int_to_ptr.vmem [resolvable:$true] %s1233
      %1236 = dma.vmem_to_hbm [thread:$0]  %s1234, 64, %s8, [#allocation3]
    $region37: #{tpu_custom_call.1} parent=1 // pred_fallthru
      _
    // Predicated region
    $region38: #{tpu_custom_call.1} parent=1 // pred_check
      _
    $region39: #{tpu_custom_call.1} parent=1 // pred_check_branch
      %1238 = sbr.rel (0) target = $region41
    $region40: #{tpu_custom_call.1} parent=1 // pred_region
      %1239 = dma.done [#allocation3], 64
    $region41: #{tpu_custom_call.1} parent=1 // pred_fallthru
      _
    %1240 = vsyncpa [#allocation3], 1

</llo_original>
